<compile_context>
chip_gen: v7x
topology: tpu7x:2x2x1
jax: 0.10.0
libtpu: 0.0.40
codegen_flags: <defaults>
</compile_context>

<pallas_src>
import functools
import math

import jax
import jax.numpy as jnp
from jax.experimental import pallas as pl
from jax.experimental.pallas import tpu as pltpu

_LANE = 128
_NEG_INF = -1e30   # softmax mask baked into the padded logit bias columns


def _round_up(x, m):
    return (x + m - 1) // m * m


# --------------------------------------------------------------------------
# One-time parameter preparation (hoisted out of the hot loop).
#   PyTorch layout in:  w_i2h (H, I+H), w_i2o (O, I+H), 1-D biases.
#   Out: wx (I, Hp+Op) bf16, wh (Hp, Hp+Op) bf16, b (1, Hp+Op) f32, packed so
#        cat([x, h],1) @ W^T + b  ==  x @ wx + h_pad @ wh + b   columnwise,
#        with columns [:Hp] = hidden (zero-padded) and [Hp:] = logits
#        (bias-padded with -1e30 so the padded lanes vanish in log_softmax).
# --------------------------------------------------------------------------
def prepare_params(w_i2h, b_i2h, w_i2o, b_i2o, input_size):
    w_i2h = jnp.asarray(w_i2h, jnp.float32)
    w_i2o = jnp.asarray(w_i2o, jnp.float32)
    b_i2h = jnp.asarray(b_i2h, jnp.float32)
    b_i2o = jnp.asarray(b_i2o, jnp.float32)

    H = w_i2h.shape[0]
    O = w_i2o.shape[0]
    I = input_size
    Hp = _round_up(H, _LANE)
    Op = _round_up(O, _LANE)

    def pad_cols(a, n):
        return jnp.pad(a, ((0, 0), (0, n - a.shape[1])))

    # x-projection: columns [hidden | logits], each block lane-tile aligned.
    wx = jnp.concatenate(
        [pad_cols(w_i2h[:, :I].T, Hp), pad_cols(w_i2o[:, :I].T, Op)], axis=1)
    # h-projection: same columns; rows padded H -> Hp (padded hidden lanes of
    # the carried state are always exactly zero, so the padding is inert).
    wh = jnp.concatenate(
        [pad_cols(w_i2h[:, I:].T, Hp), pad_cols(w_i2o[:, I:].T, Op)], axis=1)
    wh = jnp.pad(wh, ((0, Hp - H), (0, 0)))

    b = jnp.concatenate([
        jnp.pad(b_i2h, (0, Hp - H)),                                 # zeros
        jnp.pad(b_i2o, (0, Op - O), constant_values=_NEG_INF),       # mask
    ]).reshape(1, -1)

    # bf16 weights: half the DMA bytes / VMEM residency, full-rate bf16 MXU.
    return wx.astype(jnp.bfloat16), wh.astype(jnp.bfloat16), b


# --------------------------------------------------------------------------
# Kernel: one grid step == one (batch block, time block).  Hidden state lives
# in a f32 VMEM scratch across the (sequential) time-block axis.
# --------------------------------------------------------------------------
def _rnn_block_kernel(t_blk, bb, hp,
                      x_ref, h0_ref, wx_ref, wh_ref, b_ref,
                      out_ref, hf_ref, h_carry, u_scratch):
    tb = pl.program_id(1)          # time-block index (sequential, "arbitrary")

    # Start of this batch shard's time sweep: load the initial hidden state.
    @pl.when(tb == 0)
    def _():
        h_carry[...] = h0_ref[...].astype(jnp.float32)

    # ---- Hoisted input projection: ONE MXU pass for the whole time block
    # (M = t_blk*bb rows), bias folded in.  Stays off the serial chain.
    x = x_ref[...].astype(jnp.bfloat16)                      # (t_blk*bb, I)
    u_scratch[...] = (
        jnp.dot(x, wx_ref[...], preferred_element_type=jnp.float32)
        + b_ref[...])                                        # (t_blk*bb, Hp+Op)

    wh = wh_ref[...]                                         # (Hp, Hp+Op) bf16
    h = h_carry[...]                                         # (bb, Hp) f32

    # ---- Recurrence, fully unrolled at trace time (static t_blk).  Only the
    # h @ wh matmul sits on the serial dependency chain.
    for t in range(t_blk):
        u_t = u_scratch[t * bb:(t + 1) * bb, :]
        fused = u_t + jnp.dot(h.astype(jnp.bfloat16), wh,
                              preferred_element_type=jnp.float32)
        h = fused[:, :hp]             # tile-aligned view: new (padded) hidden
        logits = fused[:, hp:]        # tile-aligned view: 128-lane-padded logits

        # Numerically stable log_softmax.  Padded lanes carry -1e30 (from the
        # packed bias), so exp underflows to exactly 0 and they drop out.
        m = jnp.max(logits, axis=1, keepdims=True)
        shifted = logits - m
        lse = jnp.log(jnp.sum(jnp.exp(shifted), axis=1, keepdims=True))

        # Full-tile, lane-dense (128-wide) store into the staged output block;
        # the HBM writeback is one DMA per grid step.
        out_ref[t * bb:(t + 1) * bb, :] = shifted - lse

    h_carry[...] = h

    # Emit this batch shard's final hidden state once, at the last time block.
    @pl.when(tb == pl.num_programs(1) - 1)
    def _():
        hf_ref[...] = h


# --------------------------------------------------------------------------
# Fused sequence runner: one pallas_call for the whole sequence.
#   xs: (T, B, I), h0: (B, H)  ->  (log_probs (T, B, O), final hidden (B, H))
# --------------------------------------------------------------------------
@functools.partial(jax.jit, static_argnames=("hidden_size", "output_size",
                                             "time_block", "batch_block"))
def name_classify_rnn_sequence(xs, h0, wx, wh, b, *, hidden_size, output_size,
                               time_block=8, batch_block=None):
    T, B, I = xs.shape
    H, O = hidden_size, output_size
    Hp = _round_up(H, _LANE)
    Op = _round_up(O, _LANE)
    N = Hp + Op
    assert wx.shape == (I, N) and wh.shape == (Hp, N) and b.shape == (1, N)

    TBLK = math.gcd(T, time_block)         # block size that divides T
    BB = B if batch_block is None else batch_block
    assert B % BB == 0, "batch_block must divide batch"
    n_bb, n_tb = B // BB, T // TBLK

    # Layout plumbing (pure reshapes/transposes, outside the kernel): present
    # each (batch block, time block) as a contiguous 2-D lane-friendly slab.
    xs4 = (xs.reshape(n_tb, TBLK, n_bb, BB, I)
             .transpose(2, 0, 1, 3, 4)
             .reshape(n_bb, n_tb, TBLK * BB, I))
    h0p = jnp.pad(h0.astype(jnp.float32),
                  ((0, 0), (0, Hp - H))).reshape(n_bb, BB, Hp)

    kernel = functools.partial(_rnn_block_kernel, TBLK, BB, Hp)

    grid_spec = pltpu.PrefetchScalarGridSpec(
        num_scalar_prefetch=0,
        grid=(n_bb, n_tb),
        in_specs=[
            pl.BlockSpec((None, None, TBLK * BB, I),
                         lambda bi, ti: (bi, ti, 0, 0)),      # xs slab per block
            pl.BlockSpec((None, BB, Hp), lambda bi, ti: (bi, 0, 0)),  # h0 shard
            # Constant-index weights: fetched once, reused across the grid.
            # (For large H/O on v7x, add pipeline_mode=pl.Buffered(1) here and
            #  tile the packed column dim to respect the 64 MiB VMEM.)
            pl.BlockSpec((I, N), lambda bi, ti: (0, 0)),      # W_x  (bf16)
            pl.BlockSpec((Hp, N), lambda bi, ti: (0, 0)),     # W_h  (bf16)
            pl.BlockSpec((1, N), lambda bi, ti: (0, 0)),      # bias (f32)
        ],
        out_specs=(
            pl.BlockSpec((None, None, TBLK * BB, Op),
                         lambda bi, ti: (bi, ti, 0, 0)),      # lane-dense logp
            pl.BlockSpec((None, BB, Hp), lambda bi, ti: (bi, 0, 0)),  # final h
        ),
        scratch_shapes=[
            pltpu.VMEM((BB, Hp), jnp.float32),          # carried hidden state
            pltpu.VMEM((TBLK * BB, N), jnp.float32),    # staged x-projection
        ],
    )

    out4, hf = pl.pallas_call(
        kernel,
        out_shape=(
            jax.ShapeDtypeStruct((n_bb, n_tb, TBLK * BB, Op), jnp.float32),
            jax.ShapeDtypeStruct((n_bb, BB, Hp), jnp.float32),
        ),
        grid_spec=grid_spec,
        compiler_params=pltpu.CompilerParams(
            # batch shards may run on separate TensorCores (v7x); time is the
            # serial carried axis.
            dimension_semantics=("parallel", "arbitrary"),
            vmem_limit_bytes=32 * 1024 * 1024,
        ),
    )(xs4, h0p, wx, wh, b)

    # Undo the layout plumbing and strip the lane padding.
    outs = (out4.reshape(n_bb, n_tb, TBLK, BB, Op)
                .transpose(1, 2, 0, 3, 4)
                .reshape(T, B, Op)[:, :, :O])
    h_final = hf.reshape(B, Hp)[:, :H]
    return outs, h_final


def name_classify_rnn_step(x, h, wx, wh, b, *, hidden_size, output_size):
    """Single-step API matching the PyTorch forward(input, hidden)."""
    outs, h_new = name_classify_rnn_sequence(
        x[None], h, wx, wh, b, hidden_size=hidden_size, output_size=output_size)
    return outs[0], h_new


# --------------------------------------------------------------------------
# References (pure JAX) + init helpers
# --------------------------------------------------------------------------
def _init_linear(key, out_features, in_features):
    # PyTorch nn.Linear default init: U(-1/sqrt(fan_in), 1/sqrt(fan_in))
    kw, kb = jax.random.split(key)
    bound = 1.0 / math.sqrt(in_features)
    w = jax.random.uniform(kw, (out_features, in_features), jnp.float32,
                           minval=-bound, maxval=bound)
    b_ = jax.random.uniform(kb, (out_features,), jnp.float32,
                            minval=-bound, maxval=bound)
    return w, b_


def _reference_step(x, h, w_i2h, b_i2h, w_i2o, b_i2o):
    combined = jnp.concatenate([x, h], axis=1)
    hidden = combined @ w_i2h.T + b_i2h
    logits = combined @ w_i2o.T + b_i2o
    return jax.nn.log_softmax(logits, axis=1), hidden


def _reference_sequence(xs, h0, w_i2h, b_i2h, w_i2o, b_i2o):
    def step(h, x):
        out, h_new = _reference_step(x, h, w_i2h, b_i2h, w_i2o, b_i2o)
        return h_new, out
    h_final, outs = jax.lax.scan(step, h0, xs)
    return outs, h_final


def _mirror_sequence(xs, h0, w_i2h, b_i2h, w_i2o, b_i2o, input_size):
    """Pure-JAX reference with the SAME mixed precision as the kernel
    (bf16 matmul operands, f32 accumulation, f32 hidden carry)."""
    I = input_size
    wxh = w_i2h[:, :I].T.astype(jnp.bfloat16)
    whh = w_i2h[:, I:].T.astype(jnp.bfloat16)
    wxo = w_i2o[:, :I].T.astype(jnp.bfloat16)
    who = w_i2o[:, I:].T.astype(jnp.bfloat16)

    def step(h, x):
        xb = x.astype(jnp.bfloat16)
        hb = h.astype(jnp.bfloat16)
        hidden = (jnp.dot(xb, wxh, preferred_element_type=jnp.float32)
                  + b_i2h
                  + jnp.dot(hb, whh, preferred_element_type=jnp.float32))
        logits = (jnp.dot(xb, wxo, preferred_element_type=jnp.float32)
                  + b_i2o
                  + jnp.dot(hb, who, preferred_element_type=jnp.float32))
        return hidden, jax.nn.log_softmax(logits, axis=1)

    h_final, outs = jax.lax.scan(step, h0, xs)
    return outs, h_final


if __name__ == "__main__":
    input_size = 16
    hidden_size = 32
    output_size = 8
    batch = 8          # sublane-friendly
    seq_len = 16       # 2 time blocks of 8 -> exercises the cross-block carry

    key = jax.random.PRNGKey(0)
    k_x, k_i2h, k_i2o = jax.random.split(key, 3)

    xs = jax.random.normal(k_x, (seq_len, batch, input_size), jnp.float32)
    h0 = jnp.zeros((batch, hidden_size), jnp.float32)   # matches init_hidden()

    w_i2h, b_i2h = _init_linear(k_i2h, hidden_size, input_size + hidden_size)
    w_i2o, b_i2o = _init_linear(k_i2o, output_size, input_size + hidden_size)

    # Weight packing done ONCE (not per step).
    wx, wh, b = prepare_params(w_i2h, b_i2h, w_i2o, b_i2o, input_size)

    # Fused full-sequence kernel.
    outs, h_final = name_classify_rnn_sequence(
        xs, h0, wx, wh, b, hidden_size=hidden_size, output_size=output_size)
    jax.block_until_ready((outs, h_final))

    assert outs.shape == (seq_len, batch, output_size)
    assert h_final.shape == (batch, hidden_size)
    assert bool(jnp.all(jnp.isfinite(outs))) and bool(jnp.all(jnp.isfinite(h_final)))

    # Tight check vs a precision-matched (bf16 operands / f32 accum) reference.
    outs_mp, h_mp = _mirror_sequence(xs, h0, w_i2h, b_i2h, w_i2o, b_i2o,
                                     input_size)
    assert jnp.allclose(outs, outs_mp, atol=5e-3, rtol=5e-3)
    assert jnp.allclose(h_final, h_mp, atol=5e-3, rtol=5e-3)

    # Sanity check vs the full-f32 PyTorch-equivalent reference (looser: the
    # kernel stores weights / feeds the MXU in bf16 per the perf review).
    outs_f32, h_f32 = _reference_sequence(xs, h0, w_i2h, b_i2h, w_i2o, b_i2o)
    assert jnp.allclose(outs, outs_f32, atol=1e-1, rtol=1e-1)
    assert jnp.allclose(h_final, h_f32, atol=1e-1, rtol=1e-1)

    # Single-step API (exactly the PyTorch forward's contract).
    out1, h1 = name_classify_rnn_step(xs[0], h0, wx, wh, b,
                                      hidden_size=hidden_size,
                                      output_size=output_size)
    out1_mp, h1_mp = _mirror_sequence(xs[:1], h0, w_i2h, b_i2h, w_i2o, b_i2o,
                                      input_size)
    assert jnp.allclose(out1, out1_mp[0], atol=5e-3, rtol=5e-3)
    assert jnp.allclose(h1, h1_mp, atol=5e-3, rtol=5e-3)

    print("KERNEL_OK")
</pallas_src>

<mosaic_0001>
module attributes {stable_mosaic.version = 11 : i64} {
  func.func @_rnn_block_kernel(%arg0: i32, %arg1: i32, %arg2: memref<1x1x64x16xf32, #tpu.memory_space<vmem>>, %arg3: memref<1x8x128xf32, #tpu.memory_space<vmem>>, %arg4: memref<16x256xbf16, #tpu.memory_space<vmem>>, %arg5: memref<128x256xbf16, #tpu.memory_space<vmem>>, %arg6: memref<1x256xf32, #tpu.memory_space<vmem>>, %arg7: memref<1x1x64x128xf32, #tpu.memory_space<vmem>>, %arg8: memref<1x8x128xf32, #tpu.memory_space<vmem>>, %arg9: memref<8x128xf32, #tpu.memory_space<vmem>>, %arg10: memref<64x256xf32, #tpu.memory_space<vmem>>) attributes {dimension_semantics = [#tpu.dimension_semantics<parallel>, #tpu.dimension_semantics<arbitrary>], iteration_bounds = array<i64: 1, 2>, scalar_prefetch = 0 : i64, scratch_operands = 2 : i64, tpu.core_type = #tpu.core_type<tc>, window_params = [{transform_indices = @transform_0, window_bounds = array<i64: 1, 1, 64, 16>}, {transform_indices = @transform_1, window_bounds = array<i64: 1, 8, 128>}, {pipeline_mode = #tpu.pipeline_mode<synchronous>, transform_indices = @transform_2, window_bounds = array<i64: 16, 256>}, {pipeline_mode = #tpu.pipeline_mode<synchronous>, transform_indices = @transform_3, window_bounds = array<i64: 128, 256>}, {pipeline_mode = #tpu.pipeline_mode<synchronous>, transform_indices = @transform_4, window_bounds = array<i64: 1, 256>}, {transform_indices = @transform_5, window_bounds = array<i64: 1, 1, 64, 128>}, {transform_indices = @transform_6, window_bounds = array<i64: 1, 8, 128>}]} {
    %c0_i32 = arith.constant 0 : i32
    %0 = arith.cmpi eq, %arg1, %c0_i32 : i32
    %1 = arith.extui %0 : i1 to i32
    %c0_i32_0 = arith.constant 0 : i32
    %2 = arith.cmpi ne, %1, %c0_i32_0 : i32
    scf.if %2 {
      %c0_82 = arith.constant 0 : index
      %c0_83 = arith.constant 0 : index
      %c0_84 = arith.constant 0 : index
      %170 = vector.load %arg3[%c0_82, %c0_83, %c0_84] : memref<1x8x128xf32, #tpu.memory_space<vmem>>, vector<1x8x128xf32>
      %171 = vector.shape_cast %170 : vector<1x8x128xf32> to vector<8x128xf32>
      %c0_85 = arith.constant 0 : index
      %c0_86 = arith.constant 0 : index
      %172 = vector.load %arg9[%c0_85, %c0_86] : memref<8x128xf32, #tpu.memory_space<vmem>>, vector<8x128xf32>
      tpu.vector_store %arg9[%c0_85, %c0_86], %171 {strides = array<i32>} : memref<8x128xf32, #tpu.memory_space<vmem>>, vector<8x128xf32>,
    } else {
    }
    %c0 = arith.constant 0 : index
    %c0_1 = arith.constant 0 : index
    %c0_2 = arith.constant 0 : index
    %c0_3 = arith.constant 0 : index
    %3 = vector.load %arg2[%c0, %c0_1, %c0_2, %c0_3] : memref<1x1x64x16xf32, #tpu.memory_space<vmem>>, vector<1x1x64x16xf32>
    %4 = vector.shape_cast %3 : vector<1x1x64x16xf32> to vector<64x16xf32>
    %5 = arith.truncf %4 : vector<64x16xf32> to vector<64x16xbf16>
    %c0_4 = arith.constant 0 : index
    %c0_5 = arith.constant 0 : index
    %6 = vector.load %arg4[%c0_4, %c0_5] : memref<16x256xbf16, #tpu.memory_space<vmem>>, vector<16x256xbf16>
    %cst = arith.constant dense<0.000000e+00> : vector<64x256xf32>
    %7 = tpu.matmul %5, %6, %cst {dimension_numbers = #tpu.dot_dimension_numbers<[1], [0], [0], [1], [0, 0, 1, 1], [], []>} : vector<64x16xbf16>, vector<16x256xbf16>, vector<64x256xf32> -> vector<64x256xf32>
    %c0_6 = arith.constant 0 : index
    %c0_7 = arith.constant 0 : index
    %8 = vector.load %arg6[%c0_6, %c0_7] : memref<1x256xf32, #tpu.memory_space<vmem>>, vector<1x256xf32>
    %9 = vector.broadcast %8 : vector<1x256xf32> to vector<64x256xf32>
    %10 = arith.addf %7, %9 : vector<64x256xf32>
    %c0_8 = arith.constant 0 : index
    %c0_9 = arith.constant 0 : index
    %11 = vector.load %arg10[%c0_8, %c0_9] : memref<64x256xf32, #tpu.memory_space<vmem>>, vector<64x256xf32>
    tpu.vector_store %arg10[%c0_8, %c0_9], %10 {strides = array<i32>} : memref<64x256xf32, #tpu.memory_space<vmem>>, vector<64x256xf32>,
    %c0_10 = arith.constant 0 : index
    %c0_11 = arith.constant 0 : index
    %12 = vector.load %arg5[%c0_10, %c0_11] : memref<128x256xbf16, #tpu.memory_space<vmem>>, vector<128x256xbf16>
    %c0_12 = arith.constant 0 : index
    %c0_13 = arith.constant 0 : index
    %13 = vector.load %arg9[%c0_12, %c0_13] : memref<8x128xf32, #tpu.memory_space<vmem>>, vector<8x128xf32>
    %c0_14 = arith.constant 0 : index
    %c0_15 = arith.constant 0 : index
    %14 = vector.load %arg10[%c0_14, %c0_15] : memref<64x256xf32, #tpu.memory_space<vmem>>, vector<8x256xf32>
    %15 = arith.truncf %13 : vector<8x128xf32> to vector<8x128xbf16>
    %cst_16 = arith.constant dense<0.000000e+00> : vector<8x256xf32>
    %16 = tpu.matmul %15, %12, %cst_16 {dimension_numbers = #tpu.dot_dimension_numbers<[1], [0], [0], [1], [0, 0, 1, 1], [], []>} : vector<8x128xbf16>, vector<128x256xbf16>, vector<8x256xf32> -> vector<8x256xf32>
    %17 = arith.addf %14, %16 : vector<8x256xf32>
    %18 = vector.extract_strided_slice %17 {offsets = [0, 0], sizes = [8, 128], strides = [1, 1]} : vector<8x256xf32> to vector<8x128xf32>
    %19 = vector.extract_strided_slice %17 {offsets = [0, 128], sizes = [8, 128], strides = [1, 1]} : vector<8x256xf32> to vector<8x128xf32>
    %cst_17 = arith.constant dense<0xFF800000> : vector<8xf32>
    %20 = vector.multi_reduction <maximumf>, %19, %cst_17 [1] : vector<8x128xf32> to vector<8xf32>
    %21 = vector.shape_cast %20 : vector<8xf32> to vector<8x1xf32>
    %22 = vector.broadcast %21 : vector<8x1xf32> to vector<8x128xf32>
    %23 = arith.subf %19, %22 : vector<8x128xf32>
    %24 = math.exp %23 : vector<8x128xf32>
    %cst_18 = arith.constant dense<0.000000e+00> : vector<8xf32>
    %25 = vector.multi_reduction <add>, %24, %cst_18 [1] : vector<8x128xf32> to vector<8xf32>
    %26 = vector.shape_cast %25 : vector<8xf32> to vector<8x1xf32>
    %27 = math.log %26 : vector<8x1xf32>
    %28 = vector.broadcast %27 : vector<8x1xf32> to vector<8x128xf32>
    %29 = arith.subf %23, %28 : vector<8x128xf32>
    %c0_19 = arith.constant 0 : index
    %c0_20 = arith.constant 0 : index
    %c0_21 = arith.constant 0 : index
    %c0_22 = arith.constant 0 : index
    %30 = vector.load %arg7[%c0_19, %c0_20, %c0_21, %c0_22] : memref<1x1x64x128xf32, #tpu.memory_space<vmem>>, vector<1x1x8x128xf32>
    %31 = vector.shape_cast %30 : vector<1x1x8x128xf32> to vector<8x128xf32>
    %32 = vector.shape_cast %29 : vector<8x128xf32> to vector<1x1x8x128xf32>
    tpu.vector_store %arg7[%c0_19, %c0_20, %c0_21, %c0_22], %32 {strides = array<i32>} : memref<1x1x64x128xf32, #tpu.memory_space<vmem>>, vector<1x1x8x128xf32>,
    %c8 = arith.constant 8 : index
    %c0_23 = arith.constant 0 : index
    %33 = vector.load %arg10[%c8, %c0_23] : memref<64x256xf32, #tpu.memory_space<vmem>>, vector<8x256xf32>
    %34 = arith.truncf %18 : vector<8x128xf32> to vector<8x128xbf16>
    %cst_24 = arith.constant dense<0.000000e+00> : vector<8x256xf32>
    %35 = tpu.matmul %34, %12, %cst_24 {dimension_numbers = #tpu.dot_dimension_numbers<[1], [0], [0], [1], [0, 0, 1, 1], [], []>} : vector<8x128xbf16>, vector<128x256xbf16>, vector<8x256xf32> -> vector<8x256xf32>
    %36 = arith.addf %33, %35 : vector<8x256xf32>
    %37 = vector.extract_strided_slice %36 {offsets = [0, 0], sizes = [8, 128], strides = [1, 1]} : vector<8x256xf32> to vector<8x128xf32>
    %38 = vector.extract_strided_slice %36 {offsets = [0, 128], sizes = [8, 128], strides = [1, 1]} : vector<8x256xf32> to vector<8x128xf32>
    %cst_25 = arith.constant dense<0xFF800000> : vector<8xf32>
    %39 = vector.multi_reduction <maximumf>, %38, %cst_25 [1] : vector<8x128xf32> to vector<8xf32>
    %40 = vector.shape_cast %39 : vector<8xf32> to vector<8x1xf32>
    %41 = vector.broadcast %40 : vector<8x1xf32> to vector<8x128xf32>
    %42 = arith.subf %38, %41 : vector<8x128xf32>
    %43 = math.exp %42 : vector<8x128xf32>
    %cst_26 = arith.constant dense<0.000000e+00> : vector<8xf32>
    %44 = vector.multi_reduction <add>, %43, %cst_26 [1] : vector<8x128xf32> to vector<8xf32>
    %45 = vector.shape_cast %44 : vector<8xf32> to vector<8x1xf32>
    %46 = math.log %45 : vector<8x1xf32>
    %47 = vector.broadcast %46 : vector<8x1xf32> to vector<8x128xf32>
    %48 = arith.subf %42, %47 : vector<8x128xf32>
    %c0_27 = arith.constant 0 : index
    %c0_28 = arith.constant 0 : index
    %c8_29 = arith.constant 8 : index
    %c0_30 = arith.constant 0 : index
    %49 = vector.load %arg7[%c0_27, %c0_28, %c8_29, %c0_30] : memref<1x1x64x128xf32, #tpu.memory_space<vmem>>, vector<1x1x8x128xf32>
    %50 = vector.shape_cast %49 : vector<1x1x8x128xf32> to vector<8x128xf32>
    %51 = vector.shape_cast %48 : vector<8x128xf32> to vector<1x1x8x128xf32>
    tpu.vector_store %arg7[%c0_27, %c0_28, %c8_29, %c0_30], %51 {strides = array<i32>} : memref<1x1x64x128xf32, #tpu.memory_space<vmem>>, vector<1x1x8x128xf32>,
    %c16 = arith.constant 16 : index
    %c0_31 = arith.constant 0 : index
    %52 = vector.load %arg10[%c16, %c0_31] : memref<64x256xf32, #tpu.memory_space<vmem>>, vector<8x256xf32>
    %53 = arith.truncf %37 : vector<8x128xf32> to vector<8x128xbf16>
    %cst_32 = arith.constant dense<0.000000e+00> : vector<8x256xf32>
    %54 = tpu.matmul %53, %12, %cst_32 {dimension_numbers = #tpu.dot_dimension_numbers<[1], [0], [0], [1], [0, 0, 1, 1], [], []>} : vector<8x128xbf16>, vector<128x256xbf16>, vector<8x256xf32> -> vector<8x256xf32>
    %55 = arith.addf %52, %54 : vector<8x256xf32>
    %56 = vector.extract_strided_slice %55 {offsets = [0, 0], sizes = [8, 128], strides = [1, 1]} : vector<8x256xf32> to vector<8x128xf32>
    %57 = vector.extract_strided_slice %55 {offsets = [0, 128], sizes = [8, 128], strides = [1, 1]} : vector<8x256xf32> to vector<8x128xf32>
    %cst_33 = arith.constant dense<0xFF800000> : vector<8xf32>
    %58 = vector.multi_reduction <maximumf>, %57, %cst_33 [1] : vector<8x128xf32> to vector<8xf32>
    %59 = vector.shape_cast %58 : vector<8xf32> to vector<8x1xf32>
    %60 = vector.broadcast %59 : vector<8x1xf32> to vector<8x128xf32>
    %61 = arith.subf %57, %60 : vector<8x128xf32>
    %62 = math.exp %61 : vector<8x128xf32>
    %cst_34 = arith.constant dense<0.000000e+00> : vector<8xf32>
    %63 = vector.multi_reduction <add>, %62, %cst_34 [1] : vector<8x128xf32> to vector<8xf32>
    %64 = vector.shape_cast %63 : vector<8xf32> to vector<8x1xf32>
    %65 = math.log %64 : vector<8x1xf32>
    %66 = vector.broadcast %65 : vector<8x1xf32> to vector<8x128xf32>
    %67 = arith.subf %61, %66 : vector<8x128xf32>
    %c0_35 = arith.constant 0 : index
    %c0_36 = arith.constant 0 : index
    %c16_37 = arith.constant 16 : index
    %c0_38 = arith.constant 0 : index
    %68 = vector.load %arg7[%c0_35, %c0_36, %c16_37, %c0_38] : memref<1x1x64x128xf32, #tpu.memory_space<vmem>>, vector<1x1x8x128xf32>
    %69 = vector.shape_cast %68 : vector<1x1x8x128xf32> to vector<8x128xf32>
    %70 = vector.shape_cast %67 : vector<8x128xf32> to vector<1x1x8x128xf32>
    tpu.vector_store %arg7[%c0_35, %c0_36, %c16_37, %c0_38], %70 {strides = array<i32>} : memref<1x1x64x128xf32, #tpu.memory_space<vmem>>, vector<1x1x8x128xf32>,
    %c24 = arith.constant 24 : index
    %c0_39 = arith.constant 0 : index
    %71 = vector.load %arg10[%c24, %c0_39] : memref<64x256xf32, #tpu.memory_space<vmem>>, vector<8x256xf32>
    %72 = arith.truncf %56 : vector<8x128xf32> to vector<8x128xbf16>
    %cst_40 = arith.constant dense<0.000000e+00> : vector<8x256xf32>
    %73 = tpu.matmul %72, %12, %cst_40 {dimension_numbers = #tpu.dot_dimension_numbers<[1], [0], [0], [1], [0, 0, 1, 1], [], []>} : vector<8x128xbf16>, vector<128x256xbf16>, vector<8x256xf32> -> vector<8x256xf32>
    %74 = arith.addf %71, %73 : vector<8x256xf32>
    %75 = vector.extract_strided_slice %74 {offsets = [0, 0], sizes = [8, 128], strides = [1, 1]} : vector<8x256xf32> to vector<8x128xf32>
    %76 = vector.extract_strided_slice %74 {offsets = [0, 128], sizes = [8, 128], strides = [1, 1]} : vector<8x256xf32> to vector<8x128xf32>
    %cst_41 = arith.constant dense<0xFF800000> : vector<8xf32>
    %77 = vector.multi_reduction <maximumf>, %76, %cst_41 [1] : vector<8x128xf32> to vector<8xf32>
    %78 = vector.shape_cast %77 : vector<8xf32> to vector<8x1xf32>
    %79 = vector.broadcast %78 : vector<8x1xf32> to vector<8x128xf32>
    %80 = arith.subf %76, %79 : vector<8x128xf32>
    %81 = math.exp %80 : vector<8x128xf32>
    %cst_42 = arith.constant dense<0.000000e+00> : vector<8xf32>
    %82 = vector.multi_reduction <add>, %81, %cst_42 [1] : vector<8x128xf32> to vector<8xf32>
    %83 = vector.shape_cast %82 : vector<8xf32> to vector<8x1xf32>
    %84 = math.log %83 : vector<8x1xf32>
    %85 = vector.broadcast %84 : vector<8x1xf32> to vector<8x128xf32>
    %86 = arith.subf %80, %85 : vector<8x128xf32>
    %c0_43 = arith.constant 0 : index
    %c0_44 = arith.constant 0 : index
    %c24_45 = arith.constant 24 : index
    %c0_46 = arith.constant 0 : index
    %87 = vector.load %arg7[%c0_43, %c0_44, %c24_45, %c0_46] : memref<1x1x64x128xf32, #tpu.memory_space<vmem>>, vector<1x1x8x128xf32>
    %88 = vector.shape_cast %87 : vector<1x1x8x128xf32> to vector<8x128xf32>
    %89 = vector.shape_cast %86 : vector<8x128xf32> to vector<1x1x8x128xf32>
    tpu.vector_store %arg7[%c0_43, %c0_44, %c24_45, %c0_46], %89 {strides = array<i32>} : memref<1x1x64x128xf32, #tpu.memory_space<vmem>>, vector<1x1x8x128xf32>,
    %c32 = arith.constant 32 : index
    %c0_47 = arith.constant 0 : index
    %90 = vector.load %arg10[%c32, %c0_47] : memref<64x256xf32, #tpu.memory_space<vmem>>, vector<8x256xf32>
    %91 = arith.truncf %75 : vector<8x128xf32> to vector<8x128xbf16>
    %cst_48 = arith.constant dense<0.000000e+00> : vector<8x256xf32>
    %92 = tpu.matmul %91, %12, %cst_48 {dimension_numbers = #tpu.dot_dimension_numbers<[1], [0], [0], [1], [0, 0, 1, 1], [], []>} : vector<8x128xbf16>, vector<128x256xbf16>, vector<8x256xf32> -> vector<8x256xf32>
    %93 = arith.addf %90, %92 : vector<8x256xf32>
    %94 = vector.extract_strided_slice %93 {offsets = [0, 0], sizes = [8, 128], strides = [1, 1]} : vector<8x256xf32> to vector<8x128xf32>
    %95 = vector.extract_strided_slice %93 {offsets = [0, 128], sizes = [8, 128], strides = [1, 1]} : vector<8x256xf32> to vector<8x128xf32>
    %cst_49 = arith.constant dense<0xFF800000> : vector<8xf32>
    %96 = vector.multi_reduction <maximumf>, %95, %cst_49 [1] : vector<8x128xf32> to vector<8xf32>
    %97 = vector.shape_cast %96 : vector<8xf32> to vector<8x1xf32>
    %98 = vector.broadcast %97 : vector<8x1xf32> to vector<8x128xf32>
    %99 = arith.subf %95, %98 : vector<8x128xf32>
    %100 = math.exp %99 : vector<8x128xf32>
    %cst_50 = arith.constant dense<0.000000e+00> : vector<8xf32>
    %101 = vector.multi_reduction <add>, %100, %cst_50 [1] : vector<8x128xf32> to vector<8xf32>
    %102 = vector.shape_cast %101 : vector<8xf32> to vector<8x1xf32>
    %103 = math.log %102 : vector<8x1xf32>
    %104 = vector.broadcast %103 : vector<8x1xf32> to vector<8x128xf32>
    %105 = arith.subf %99, %104 : vector<8x128xf32>
    %c0_51 = arith.constant 0 : index
    %c0_52 = arith.constant 0 : index
    %c32_53 = arith.constant 32 : index
    %c0_54 = arith.constant 0 : index
    %106 = vector.load %arg7[%c0_51, %c0_52, %c32_53, %c0_54] : memref<1x1x64x128xf32, #tpu.memory_space<vmem>>, vector<1x1x8x128xf32>
    %107 = vector.shape_cast %106 : vector<1x1x8x128xf32> to vector<8x128xf32>
    %108 = vector.shape_cast %105 : vector<8x128xf32> to vector<1x1x8x128xf32>
    tpu.vector_store %arg7[%c0_51, %c0_52, %c32_53, %c0_54], %108 {strides = array<i32>} : memref<1x1x64x128xf32, #tpu.memory_space<vmem>>, vector<1x1x8x128xf32>,
    %c40 = arith.constant 40 : index
    %c0_55 = arith.constant 0 : index
    %109 = vector.load %arg10[%c40, %c0_55] : memref<64x256xf32, #tpu.memory_space<vmem>>, vector<8x256xf32>
    %110 = arith.truncf %94 : vector<8x128xf32> to vector<8x128xbf16>
    %cst_56 = arith.constant dense<0.000000e+00> : vector<8x256xf32>
    %111 = tpu.matmul %110, %12, %cst_56 {dimension_numbers = #tpu.dot_dimension_numbers<[1], [0], [0], [1], [0, 0, 1, 1], [], []>} : vector<8x128xbf16>, vector<128x256xbf16>, vector<8x256xf32> -> vector<8x256xf32>
    %112 = arith.addf %109, %111 : vector<8x256xf32>
    %113 = vector.extract_strided_slice %112 {offsets = [0, 0], sizes = [8, 128], strides = [1, 1]} : vector<8x256xf32> to vector<8x128xf32>
    %114 = vector.extract_strided_slice %112 {offsets = [0, 128], sizes = [8, 128], strides = [1, 1]} : vector<8x256xf32> to vector<8x128xf32>
    %cst_57 = arith.constant dense<0xFF800000> : vector<8xf32>
    %115 = vector.multi_reduction <maximumf>, %114, %cst_57 [1] : vector<8x128xf32> to vector<8xf32>
    %116 = vector.shape_cast %115 : vector<8xf32> to vector<8x1xf32>
    %117 = vector.broadcast %116 : vector<8x1xf32> to vector<8x128xf32>
    %118 = arith.subf %114, %117 : vector<8x128xf32>
    %119 = math.exp %118 : vector<8x128xf32>
    %cst_58 = arith.constant dense<0.000000e+00> : vector<8xf32>
    %120 = vector.multi_reduction <add>, %119, %cst_58 [1] : vector<8x128xf32> to vector<8xf32>
    %121 = vector.shape_cast %120 : vector<8xf32> to vector<8x1xf32>
    %122 = math.log %121 : vector<8x1xf32>
    %123 = vector.broadcast %122 : vector<8x1xf32> to vector<8x128xf32>
    %124 = arith.subf %118, %123 : vector<8x128xf32>
    %c0_59 = arith.constant 0 : index
    %c0_60 = arith.constant 0 : index
    %c40_61 = arith.constant 40 : index
    %c0_62 = arith.constant 0 : index
    %125 = vector.load %arg7[%c0_59, %c0_60, %c40_61, %c0_62] : memref<1x1x64x128xf32, #tpu.memory_space<vmem>>, vector<1x1x8x128xf32>
    %126 = vector.shape_cast %125 : vector<1x1x8x128xf32> to vector<8x128xf32>
    %127 = vector.shape_cast %124 : vector<8x128xf32> to vector<1x1x8x128xf32>
    tpu.vector_store %arg7[%c0_59, %c0_60, %c40_61, %c0_62], %127 {strides = array<i32>} : memref<1x1x64x128xf32, #tpu.memory_space<vmem>>, vector<1x1x8x128xf32>,
    %c48 = arith.constant 48 : index
    %c0_63 = arith.constant 0 : index
    %128 = vector.load %arg10[%c48, %c0_63] : memref<64x256xf32, #tpu.memory_space<vmem>>, vector<8x256xf32>
    %129 = arith.truncf %113 : vector<8x128xf32> to vector<8x128xbf16>
    %cst_64 = arith.constant dense<0.000000e+00> : vector<8x256xf32>
    %130 = tpu.matmul %129, %12, %cst_64 {dimension_numbers = #tpu.dot_dimension_numbers<[1], [0], [0], [1], [0, 0, 1, 1], [], []>} : vector<8x128xbf16>, vector<128x256xbf16>, vector<8x256xf32> -> vector<8x256xf32>
    %131 = arith.addf %128, %130 : vector<8x256xf32>
    %132 = vector.extract_strided_slice %131 {offsets = [0, 0], sizes = [8, 128], strides = [1, 1]} : vector<8x256xf32> to vector<8x128xf32>
    %133 = vector.extract_strided_slice %131 {offsets = [0, 128], sizes = [8, 128], strides = [1, 1]} : vector<8x256xf32> to vector<8x128xf32>
    %cst_65 = arith.constant dense<0xFF800000> : vector<8xf32>
    %134 = vector.multi_reduction <maximumf>, %133, %cst_65 [1] : vector<8x128xf32> to vector<8xf32>
    %135 = vector.shape_cast %134 : vector<8xf32> to vector<8x1xf32>
    %136 = vector.broadcast %135 : vector<8x1xf32> to vector<8x128xf32>
    %137 = arith.subf %133, %136 : vector<8x128xf32>
    %138 = math.exp %137 : vector<8x128xf32>
    %cst_66 = arith.constant dense<0.000000e+00> : vector<8xf32>
    %139 = vector.multi_reduction <add>, %138, %cst_66 [1] : vector<8x128xf32> to vector<8xf32>
    %140 = vector.shape_cast %139 : vector<8xf32> to vector<8x1xf32>
    %141 = math.log %140 : vector<8x1xf32>
    %142 = vector.broadcast %141 : vector<8x1xf32> to vector<8x128xf32>
    %143 = arith.subf %137, %142 : vector<8x128xf32>
    %c0_67 = arith.constant 0 : index
    %c0_68 = arith.constant 0 : index
    %c48_69 = arith.constant 48 : index
    %c0_70 = arith.constant 0 : index
    %144 = vector.load %arg7[%c0_67, %c0_68, %c48_69, %c0_70] : memref<1x1x64x128xf32, #tpu.memory_space<vmem>>, vector<1x1x8x128xf32>
    %145 = vector.shape_cast %144 : vector<1x1x8x128xf32> to vector<8x128xf32>
    %146 = vector.shape_cast %143 : vector<8x128xf32> to vector<1x1x8x128xf32>
    tpu.vector_store %arg7[%c0_67, %c0_68, %c48_69, %c0_70], %146 {strides = array<i32>} : memref<1x1x64x128xf32, #tpu.memory_space<vmem>>, vector<1x1x8x128xf32>,
    %c56 = arith.constant 56 : index
    %c0_71 = arith.constant 0 : index
    %147 = vector.load %arg10[%c56, %c0_71] : memref<64x256xf32, #tpu.memory_space<vmem>>, vector<8x256xf32>
    %148 = arith.truncf %132 : vector<8x128xf32> to vector<8x128xbf16>
    %cst_72 = arith.constant dense<0.000000e+00> : vector<8x256xf32>
    %149 = tpu.matmul %148, %12, %cst_72 {dimension_numbers = #tpu.dot_dimension_numbers<[1], [0], [0], [1], [0, 0, 1, 1], [], []>} : vector<8x128xbf16>, vector<128x256xbf16>, vector<8x256xf32> -> vector<8x256xf32>
    %150 = arith.addf %147, %149 : vector<8x256xf32>
    %151 = vector.extract_strided_slice %150 {offsets = [0, 0], sizes = [8, 128], strides = [1, 1]} : vector<8x256xf32> to vector<8x128xf32>
    %152 = vector.extract_strided_slice %150 {offsets = [0, 128], sizes = [8, 128], strides = [1, 1]} : vector<8x256xf32> to vector<8x128xf32>
    %cst_73 = arith.constant dense<0xFF800000> : vector<8xf32>
    %153 = vector.multi_reduction <maximumf>, %152, %cst_73 [1] : vector<8x128xf32> to vector<8xf32>
    %154 = vector.shape_cast %153 : vector<8xf32> to vector<8x1xf32>
    %155 = vector.broadcast %154 : vector<8x1xf32> to vector<8x128xf32>
    %156 = arith.subf %152, %155 : vector<8x128xf32>
    %157 = math.exp %156 : vector<8x128xf32>
    %cst_74 = arith.constant dense<0.000000e+00> : vector<8xf32>
    %158 = vector.multi_reduction <add>, %157, %cst_74 [1] : vector<8x128xf32> to vector<8xf32>
    %159 = vector.shape_cast %158 : vector<8xf32> to vector<8x1xf32>
    %160 = math.log %159 : vector<8x1xf32>
    %161 = vector.broadcast %160 : vector<8x1xf32> to vector<8x128xf32>
    %162 = arith.subf %156, %161 : vector<8x128xf32>
    %c0_75 = arith.constant 0 : index
    %c0_76 = arith.constant 0 : index
    %c56_77 = arith.constant 56 : index
    %c0_78 = arith.constant 0 : index
    %163 = vector.load %arg7[%c0_75, %c0_76, %c56_77, %c0_78] : memref<1x1x64x128xf32, #tpu.memory_space<vmem>>, vector<1x1x8x128xf32>
    %164 = vector.shape_cast %163 : vector<1x1x8x128xf32> to vector<8x128xf32>
    %165 = vector.shape_cast %162 : vector<8x128xf32> to vector<1x1x8x128xf32>
    tpu.vector_store %arg7[%c0_75, %c0_76, %c56_77, %c0_78], %165 {strides = array<i32>} : memref<1x1x64x128xf32, #tpu.memory_space<vmem>>, vector<1x1x8x128xf32>,
    %c0_79 = arith.constant 0 : index
    %c0_80 = arith.constant 0 : index
    %166 = vector.load %arg9[%c0_79, %c0_80] : memref<8x128xf32, #tpu.memory_space<vmem>>, vector<8x128xf32>
    tpu.vector_store %arg9[%c0_79, %c0_80], %151 {strides = array<i32>} : memref<8x128xf32, #tpu.memory_space<vmem>>, vector<8x128xf32>,
    %c1_i32 = arith.constant 1 : i32
    %167 = arith.cmpi eq, %arg1, %c1_i32 : i32
    %168 = arith.extui %167 : i1 to i32
    %c0_i32_81 = arith.constant 0 : i32
    %169 = arith.cmpi ne, %168, %c0_i32_81 : i32
    scf.if %169 {
      %c0_82 = arith.constant 0 : index
      %c0_83 = arith.constant 0 : index
      %c0_84 = arith.constant 0 : index
      %170 = vector.load %arg8[%c0_82, %c0_83, %c0_84] : memref<1x8x128xf32, #tpu.memory_space<vmem>>, vector<1x8x128xf32>
      %171 = vector.shape_cast %170 : vector<1x8x128xf32> to vector<8x128xf32>
      %172 = vector.shape_cast %151 : vector<8x128xf32> to vector<1x8x128xf32>
      tpu.vector_store %arg8[%c0_82, %c0_83, %c0_84], %172 {strides = array<i32>} : memref<1x8x128xf32, #tpu.memory_space<vmem>>, vector<1x8x128xf32>,
    } else {
    }
    return
  }
  func.func @transform_0(%arg0: i32, %arg1: i32) -> (i32, i32, i32, i32) {
    %c0_i32 = arith.constant 0 : i32
    %c0_i32_0 = arith.constant 0 : i32
    %c0_i32_1 = arith.constant 0 : i32
    return %arg0, %arg1, %c0_i32, %c0_i32_0 : i32, i32, i32, i32
  }
  func.func @transform_1(%arg0: i32, %arg1: i32) -> (i32, i32, i32) {
    %c0_i32 = arith.constant 0 : i32
    %c0_i32_0 = arith.constant 0 : i32
    %c0_i32_1 = arith.constant 0 : i32
    return %arg0, %c0_i32, %c0_i32_0 : i32, i32, i32
  }
  func.func @transform_2(%arg0: i32, %arg1: i32) -> (i32, i32) {
    %c0_i32 = arith.constant 0 : i32
    %c0_i32_0 = arith.constant 0 : i32
    %c0_i32_1 = arith.constant 0 : i32
    return %c0_i32, %c0_i32_0 : i32, i32
  }
  func.func @transform_3(%arg0: i32, %arg1: i32) -> (i32, i32) {
    %c0_i32 = arith.constant 0 : i32
    %c0_i32_0 = arith.constant 0 : i32
    %c0_i32_1 = arith.constant 0 : i32
    return %c0_i32, %c0_i32_0 : i32, i32
  }
  func.func @transform_4(%arg0: i32, %arg1: i32) -> (i32, i32) {
    %c0_i32 = arith.constant 0 : i32
    %c0_i32_0 = arith.constant 0 : i32
    %c0_i32_1 = arith.constant 0 : i32
    return %c0_i32, %c0_i32_0 : i32, i32
  }
  func.func @transform_5(%arg0: i32, %arg1: i32) -> (i32, i32, i32, i32) {
    %c0_i32 = arith.constant 0 : i32
    %c0_i32_0 = arith.constant 0 : i32
    %c0_i32_1 = arith.constant 0 : i32
    return %arg0, %arg1, %c0_i32, %c0_i32_0 : i32, i32, i32, i32
  }
  func.func @transform_6(%arg0: i32, %arg1: i32) -> (i32, i32, i32) {
    %c0_i32 = arith.constant 0 : i32
    %c0_i32_0 = arith.constant 0 : i32
    %c0_i32_1 = arith.constant 0 : i32
    return %arg0, %c0_i32, %c0_i32_0 : i32, i32, i32
  }
}

</mosaic_0001>

<llo_original>
// kernel: name_classify_rnn_sequence.1
$region0: #{name_classify_rnn_sequence.1}
  #allocation0 [shape = 'u32[]', space=smem, size = 0x4, offset = 0x4, fixed_abs, tag = 'smem constant byte address 0x4 - core index']
  #allocation1 [shape = 'u32[144,128]{1,0:T(1,128)}', space=vmem, size = 0x12000, scoped, tag = 'internal scratch']
  #allocation2 [shape = 'f32[8,128]{1,0:T(8,128)}', space=vmem, size = 0x1000, scoped, tag = 'scratch operand']
  #allocation3 [shape = 'f32[64,256]{1,0:T(8,128)}', space=vmem, size = 0x10000, scoped, tag = 'scratch operand']
  %s0 = inlined_call_operand.hbm [shape: f32[1,2,64,16], index: 0, kind: input, shape index: {}]
  %s1 = inlined_call_operand.vmem [shape: f32[1,8,128], index: 1, kind: input, shape index: {}]
  %s2 = inlined_call_operand.vmem [shape: bf16[16,256], index: 2, kind: input, shape index: {}]
  %s3 = inlined_call_operand.hbm [shape: bf16[128,256], index: 3, kind: input, shape index: {}]
  %s4 = inlined_call_operand.vmem [shape: f32[1,256], index: 4, kind: input, shape index: {}]
  %s5 = inlined_call_operand.vmem [shape: f32[1,2,64,128], index: 5, kind: output, shape index: {0}]
  %s6 = inlined_call_operand.hbm [shape: f32[1,8,128], index: 6, kind: output, shape index: {1}]
  %7 = xla_tuple %s5, %s6
  %s8 = sld [smem:[#allocation0]]
  $region77: #{name_classify_rnn_sequence.1} parent=0
    _
  %s10 = ssub.s32 1, %s8
  %s11 = scalar_select 0, %s10, %s8
  $region1: #{name_classify_rnn_sequence.1} parent=0
    #allocation4 [shape = 'u8[65536]{0}', space=vmem, size = 0x10000, scoped, tag = 'input window, operand 0']
    #allocation5 [shape = 's32[2]{0}', space=sflag, size = 0x8, scoped, tag = 'scoped memory for name_classify_rnn_sequence.1']
    #allocation6 [shape = 's32[2]{0}', space=sflag, size = 0x8, scoped, tag = 'scoped memory for name_classify_rnn_sequence.1']
    #allocation7 [shape = 'u8[65536]{0}', space=vmem, size = 0x10000, scoped, tag = 'input window, operand 3, single buffered']
    #allocation8 [shape = 's32[1]{0}', space=sflag, size = 0x4, scoped, tag = 'scoped memory for name_classify_rnn_sequence.1']
    #allocation9 [shape = 'u8[4096]{0}', space=vmem, size = 0x1000, scoped, tag = 'output window, operand 1, single buffered']
    %12 = vsyncpa [#allocation5], 0
    %s13 = scalar_lea.sflag [#allocation5], 1
    %14 = vsyncpa %s13, 0
    %15 = vsyncpa [#allocation8], 0
    %16 = vsyncpa [#allocation6], 0
    loop: start=0, step=1, limit=4
    $region2: #{name_classify_rnn_sequence.1} parent=1 // loop_pre_header
      _
    $region3: #{name_classify_rnn_sequence.1} parent=1 // loop_header
      %s18 = sphi 0, %s22
      %p19 = scmp.ge.s32.totalorder %s18, 4
      %s25 = sphi 0, %s37
      %s26 = sphi 0, %s33
      %s27 = sphi 0, %s25
      %s28 = sphi 0, %s26
      %s29 = sphi 0, %s27
      %s30 = sphi 0, %s28
      %s42 = sphi 0, %s44
      %s45 = sphi 0, %s42
      %s46 = sphi 0, %s45
      %s62 = sphi 0, %s46
      %s68 = sphi 0, %s70
      %s71 = sphi 0, %s68
      %s72 = sphi 0, %s71
      %s88 = sphi 0, %s72
      %s92 = sphi 0, %s92
      %s94 = sphi 0, %s92
      %s95 = sphi 0, %s94
      %s109 = sphi 0, %s95
      %s113 = sphi 0, %s113
      %s115 = sphi 0, %s113
      %s116 = sphi 0, %s115
      %s130 = sphi 0, %s116
      %s134 = sphi 0, %s134
      %s136 = sphi 0, %s134
      %s137 = sphi 0, %s136
      %s151 = sphi 0, %s137
      %s159 = sphi 0, %s161
      %s162 = sphi 0, %s159
      %s163 = sphi 0, %s162
      %s179 = sphi 0, %s163
      %s185 = sphi 0, %s187
      %s188 = sphi 0, %s185
      %s189 = sphi 0, %s188
      %s205 = sphi 0, %s189
    $region4: #{name_classify_rnn_sequence.1} parent=1 // loop_header_branch
      %21 = sbr.rel (%p19) target = $region8
    $region5: #{name_classify_rnn_sequence.1} parent=1 // loop_body
      %s23 = ssub.s32 %s18, 1
      %s24 = ssub.s32 %s18, 2
      %s31 = sadd.s32 1, %s26
      %p32 = scmp.ge.s32.totalorder %s31, 2
      %s33 = scalar_select %p32, 0, %s31
      %s34 = sadd.s32 1, %s25
      %s35 = scalar_select %p32, %s34, %s25
      %p36 = scmp.ge.s32.totalorder %s35, 1
      %s37 = scalar_select %p36, 0, %s35
      %s38 = ssub.s32 %s25, %s37
      %s39 = ssub.s32 %s26, %s33
      %s40 = sor.u32 %s38, %s39
      %p41 = scmp.eq.s32.totalorder %s40, 0
      %s43 = sadd.s32 %s42, 1
      %s44 = scalar_select %p41, %s42, %s43
      %p47 = pneg %p41
      %p48 = scmp.eq.s32.totalorder %s18, 1
      %p49 = por %p47, %p48
      %p50 = scmp.ne.s32.totalorder %s42, %s45
      %p51 = scmp.eq.s32.totalorder %s18, 0
      %p52 = por %p50, %p51
      %p53 = scmp.ne.s32.totalorder %s42, %s45
      %p54 = scmp.eq.s32.totalorder %s23, 1
      %p55 = por %p53, %p54
      %p56 = scmp.ne.s32.totalorder %s45, %s46
      %p57 = scmp.eq.s32.totalorder %s23, 0
      %p58 = por %p56, %p57
      %p59 = scmp.ne.s32.totalorder %s45, %s46
      %p60 = scmp.eq.s32.totalorder %s24, 1
      %p61 = por %p59, %p60
      %p63 = scmp.ne.s32.totalorder %s46, %s62
      %p64 = scmp.eq.s32.totalorder %s24, 0
      %p65 = por %p63, %p64
      %s66 = ssub.s32 %s25, %s37
      %p67 = scmp.eq.s32.totalorder %s66, 0
      %s69 = sadd.s32 %s68, 1
      %s70 = scalar_select %p67, %s68, %s69
      %p73 = pneg %p67
      %p74 = scmp.eq.s32.totalorder %s18, 1
      %p75 = por %p73, %p74
      %p76 = scmp.ne.s32.totalorder %s68, %s71
      %p77 = scmp.eq.s32.totalorder %s18, 0
      %p78 = por %p76, %p77
      %p79 = scmp.ne.s32.totalorder %s68, %s71
      %p80 = scmp.eq.s32.totalorder %s23, 1
      %p81 = por %p79, %p80
      %p82 = scmp.ne.s32.totalorder %s71, %s72
      %p83 = scmp.eq.s32.totalorder %s23, 0
      %p84 = por %p82, %p83
      %p85 = scmp.ne.s32.totalorder %s71, %s72
      %p86 = scmp.eq.s32.totalorder %s24, 1
      %p87 = por %p85, %p86
      %p89 = scmp.ne.s32.totalorder %s72, %s88
      %p90 = scmp.eq.s32.totalorder %s24, 0
      %p91 = por %p89, %p90
      %s93 = sadd.s32 %s92, 1
      %p96 = scmp.eq.s32.totalorder %s18, 1
      %p97 = scmp.ne.s32.totalorder %s92, %s94
      %p98 = scmp.eq.s32.totalorder %s18, 0
      %p99 = por %p97, %p98
      %p100 = scmp.ne.s32.totalorder %s92, %s94
      %p101 = scmp.eq.s32.totalorder %s23, 1
      %p102 = por %p100, %p101
      %p103 = scmp.ne.s32.totalorder %s94, %s95
      %p104 = scmp.eq.s32.totalorder %s23, 0
      %p105 = por %p103, %p104
      %p106 = scmp.ne.s32.totalorder %s94, %s95
      %p107 = scmp.eq.s32.totalorder %s24, 1
      %p108 = por %p106, %p107
      %p110 = scmp.ne.s32.totalorder %s95, %s109
      %p111 = scmp.eq.s32.totalorder %s24, 0
      %p112 = por %p110, %p111
      %s114 = sadd.s32 %s113, 1
      %p117 = scmp.eq.s32.totalorder %s18, 1
      %p118 = scmp.ne.s32.totalorder %s113, %s115
      %p119 = scmp.eq.s32.totalorder %s18, 0
      %p120 = por %p118, %p119
      %p121 = scmp.ne.s32.totalorder %s113, %s115
      %p122 = scmp.eq.s32.totalorder %s23, 1
      %p123 = por %p121, %p122
      %p124 = scmp.ne.s32.totalorder %s115, %s116
      %p125 = scmp.eq.s32.totalorder %s23, 0
      %p126 = por %p124, %p125
      %p127 = scmp.ne.s32.totalorder %s115, %s116
      %p128 = scmp.eq.s32.totalorder %s24, 1
      %p129 = por %p127, %p128
      %p131 = scmp.ne.s32.totalorder %s116, %s130
      %p132 = scmp.eq.s32.totalorder %s24, 0
      %p133 = por %p131, %p132
      %s135 = sadd.s32 %s134, 1
      %p138 = scmp.eq.s32.totalorder %s18, 1
      %p139 = scmp.ne.s32.totalorder %s134, %s136
      %p140 = scmp.eq.s32.totalorder %s18, 0
      %p141 = por %p139, %p140
      %p142 = scmp.ne.s32.totalorder %s134, %s136
      %p143 = scmp.eq.s32.totalorder %s23, 1
      %p144 = por %p142, %p143
      %p145 = scmp.ne.s32.totalorder %s136, %s137
      %p146 = scmp.eq.s32.totalorder %s23, 0
      %p147 = por %p145, %p146
      %p148 = scmp.ne.s32.totalorder %s136, %s137
      %p149 = scmp.eq.s32.totalorder %s24, 1
      %p150 = por %p148, %p149
      %p152 = scmp.ne.s32.totalorder %s137, %s151
      %p153 = scmp.eq.s32.totalorder %s24, 0
      %p154 = por %p152, %p153
      %s155 = ssub.s32 %s25, %s37
      %s156 = ssub.s32 %s26, %s33
      %s157 = sor.u32 %s155, %s156
      %p158 = scmp.eq.s32.totalorder %s157, 0
      %s160 = sadd.s32 %s159, 1
      %s161 = scalar_select %p158, %s159, %s160
      %p164 = pneg %p158
      %p165 = scmp.eq.s32.totalorder %s18, 1
      %p166 = por %p164, %p165
      %p167 = scmp.ne.s32.totalorder %s159, %s162
      %p168 = scmp.eq.s32.totalorder %s18, 0
      %p169 = por %p167, %p168
      %p170 = scmp.ne.s32.totalorder %s159, %s162
      %p171 = scmp.eq.s32.totalorder %s23, 1
      %p172 = por %p170, %p171
      %p173 = scmp.ne.s32.totalorder %s162, %s163
      %p174 = scmp.eq.s32.totalorder %s23, 0
      %p175 = por %p173, %p174
      %p176 = scmp.ne.s32.totalorder %s162, %s163
      %p177 = scmp.eq.s32.totalorder %s24, 1
      %p178 = por %p176, %p177
      %p180 = scmp.ne.s32.totalorder %s163, %s179
      %p181 = scmp.eq.s32.totalorder %s24, 0
      %p182 = por %p180, %p181
      %s183 = ssub.s32 %s25, %s37
      %p184 = scmp.eq.s32.totalorder %s183, 0
      %s186 = sadd.s32 %s185, 1
      %s187 = scalar_select %p184, %s185, %s186
      %p190 = pneg %p184
      %p191 = scmp.eq.s32.totalorder %s18, 1
      %p192 = por %p190, %p191
      %p193 = scmp.ne.s32.totalorder %s185, %s188
      %p194 = scmp.eq.s32.totalorder %s18, 0
      %p195 = por %p193, %p194
      %p196 = scmp.ne.s32.totalorder %s185, %s188
      %p197 = scmp.eq.s32.totalorder %s23, 1
      %p198 = por %p196, %p197
      %p199 = scmp.ne.s32.totalorder %s188, %s189
      %p200 = scmp.eq.s32.totalorder %s23, 0
      %p201 = por %p199, %p200
      %p202 = scmp.ne.s32.totalorder %s188, %s189
      %p203 = scmp.eq.s32.totalorder %s24, 1
      %p204 = por %p202, %p203
      %p206 = scmp.ne.s32.totalorder %s189, %s205
      %p207 = scmp.eq.s32.totalorder %s24, 0
      %p208 = por %p206, %p207
      %p209 = scmp.le.s32.totalorder 1, %s18
      %p210 = scmp.lt.s32.totalorder %s18, 3
      %p211 = pnand %p209, %p210
      %p212 = pneg %p211
      // Predicated region
      $region9: #{name_classify_rnn_sequence.1} parent=5 // pred_check
        _
      $region10: #{name_classify_rnn_sequence.1} parent=5 // pred_check_branch
        %214 = sbr.rel (%p211) target = $region12
      $region11: #{name_classify_rnn_sequence.1} parent=5 // pred_region
        %s215 = ssub.s32 %s18, 1
        // Predicated region
        $region13: #{name_classify_rnn_sequence.1} parent=11 // pred_check
          %p216 = pneg %p84
        $region14: #{name_classify_rnn_sequence.1} parent=11 // pred_check_branch
          %218 = sbr.rel (%p216) target = $region16
        $region15: #{name_classify_rnn_sequence.1} parent=11 // pred_region
          %p219 = scmp.lt.s32.totalorder %s27, 0
          %s220 = scalar_select %p219, %s27, 0
          %s221 = smul.addr %s220, 8
          %s222 = scalar_lea.vmem %s1, %s221
        $region16: #{name_classify_rnn_sequence.1} parent=11 // pred_fallthru
          _
        // Predicated region
        $region17: #{name_classify_rnn_sequence.1} parent=11 // pred_check
          %p223 = pneg %p105
        $region18: #{name_classify_rnn_sequence.1} parent=11 // pred_check_branch
          %225 = sbr.rel (%p223) target = $region20
        $region19: #{name_classify_rnn_sequence.1} parent=11 // pred_region
          _
        $region20: #{name_classify_rnn_sequence.1} parent=11 // pred_fallthru
          _
        // Predicated region
        $region21: #{name_classify_rnn_sequence.1} parent=11 // pred_check
          %p226 = pneg %p126
        $region22: #{name_classify_rnn_sequence.1} parent=11 // pred_check_branch
          %228 = sbr.rel (%p226) target = $region24
        $region23: #{name_classify_rnn_sequence.1} parent=11 // pred_region
          %s230 = ssub.s32 2048, 2048
          %231 = vsyncadd [#allocation8], %s230
          %s232 = sshll.u32 [#allocation7], 4
          %s233 = int_to_ptr.vmem [resolvable:$true] %s232
          %238 = dma.hbm_to_vmem [thread:$0]  %s3, 2048, %s233, [#allocation8], 128, 128, 8
        $region24: #{name_classify_rnn_sequence.1} parent=11 // pred_fallthru
          _
        // Predicated region
        $region25: #{name_classify_rnn_sequence.1} parent=11 // pred_check
          %p239 = pneg %p147
        $region26: #{name_classify_rnn_sequence.1} parent=11 // pred_check_branch
          %241 = sbr.rel (%p239) target = $region28
        $region27: #{name_classify_rnn_sequence.1} parent=11 // pred_region
          _
        $region28: #{name_classify_rnn_sequence.1} parent=11 // pred_fallthru
          _
      $region12: #{name_classify_rnn_sequence.1} parent=5 // pred_fallthru
        _
      %p242 = scmp.lt.s32.totalorder %s18, 2
      // Predicated region
      $region29: #{name_classify_rnn_sequence.1} parent=5 // pred_check
        %p243 = pneg %p242
      $region30: #{name_classify_rnn_sequence.1} parent=5 // pred_check_branch
        %245 = sbr.rel (%p243) target = $region32
      $region31: #{name_classify_rnn_sequence.1} parent=5 // pred_region
        // Predicated region
        $region33: #{name_classify_rnn_sequence.1} parent=31 // pred_check
          %p246 = pneg %p52
        $region34: #{name_classify_rnn_sequence.1} parent=31 // pred_check_branch
          %248 = sbr.rel (%p246) target = $region36
        $region35: #{name_classify_rnn_sequence.1} parent=31 // pred_region
          %s249 = sand.u32 %s42, 1
          %s250 = scalar_lea.sflag [#allocation5], %s249
          %s251 = sand.u32 %s42, 1
          %s252 = smul.addr %s251, 64
          %s253 = scalar_lea.vmem [#allocation4], %s252
          %s255 = ssub.s32 1024, 1024
          %256 = vsyncadd %s250, %s255
          %s257 = smul.addr %s26, 8
          %s258 = smul.addr %s25, 16
          %s259 = sadd.s32 %s257, %s258
          %s260 = smul.addr %s259, 128
          %s261 = scalar_lea.hbm %s0, %s260
          %s262 = sshll.u32 %s253, 4
          %s263 = int_to_ptr.vmem [resolvable:$true] %s262
          %268 = dma.hbm_to_vmem [thread:$0]  %s261, 1024, %s263, %s250, 128, 128, 8
        $region36: #{name_classify_rnn_sequence.1} parent=31 // pred_fallthru
          _
      $region32: #{name_classify_rnn_sequence.1} parent=5 // pred_fallthru
        _
      %p269 = scmp.le.s32.totalorder 1, %s18
      %p270 = scmp.lt.s32.totalorder %s18, 3
      %p271 = pnand %p269, %p270
      %p272 = pneg %p271
      // Predicated region
      $region37: #{name_classify_rnn_sequence.1} parent=5 // pred_check
        _
      $region38: #{name_classify_rnn_sequence.1} parent=5 // pred_check_branch
        %274 = sbr.rel (%p271) target = $region40
      $region39: #{name_classify_rnn_sequence.1} parent=5 // pred_region
        %s275 = ssub.s32 %s18, 1
        %s276 = sand.u32 %s45, 1
        %s277 = scalar_lea.sflag [#allocation5], %s276
        %s278 = sand.u32 %s45, 1
        %s279 = smul.addr %s278, 64
        %s280 = scalar_lea.vmem [#allocation4], %s279
        // Predicated region
        $region41: #{name_classify_rnn_sequence.1} parent=39 // pred_check
          %p281 = pneg %p58
        $region42: #{name_classify_rnn_sequence.1} parent=39 // pred_check_branch
          %283 = sbr.rel (%p281) target = $region44
        $region43: #{name_classify_rnn_sequence.1} parent=39 // pred_region
          %284 = dma.done %s277, 1024
        $region44: #{name_classify_rnn_sequence.1} parent=39 // pred_fallthru
          _
        // Predicated region
        $region45: #{name_classify_rnn_sequence.1} parent=39 // pred_check
          %p285 = pneg %p126
        $region46: #{name_classify_rnn_sequence.1} parent=39 // pred_check_branch
          %287 = sbr.rel (%p285) target = $region48
        $region47: #{name_classify_rnn_sequence.1} parent=39 // pred_region
          %288 = dma.done [#allocation8], 2048
        $region48: #{name_classify_rnn_sequence.1} parent=39 // pred_fallthru
          _
        %s289 = sand.u32 %s45, 1
        %s290 = scalar_lea.sflag [#allocation5], %s289
        %s291 = sand.u32 %s45, 1
        %s292 = smul.addr %s291, 64
        %s293 = scalar_lea.vmem [#allocation4], %s292
        %p294 = pneg %p58
        %p295 = pneg %p55
        %p296 = scmp.lt.s32.totalorder %s27, 0
        %s297 = scalar_select %p296, %s27, 0
        %s298 = smul.addr %s297, 8
        %s299 = scalar_lea.vmem %s1, %s298
        %p300 = pneg %p84
        %p301 = pneg %p81
        %p302 = pneg %p105
        %p303 = pneg %p102
        %p304 = pneg %p126
        %p305 = pneg %p123
        %p306 = pneg %p147
        %p307 = pneg %p144
        %p308 = pneg %p175
        %p309 = pneg %p172
        %p310 = scmp.lt.s32.totalorder %s27, 0
        %s311 = scalar_select %p310, %s27, 0
        %p312 = scmp.lt.s32.totalorder %s28, 1
        %s313 = scalar_select %p312, %s28, 1
        %s314 = smul.addr %s313, 8
        %s315 = smul.addr %s311, 16
        %s316 = sadd.s32 %s314, %s315
        %s317 = smul.addr %s316, 8
        %s318 = scalar_lea.vmem %s5, %s317
        %p319 = pneg %p201
        %p320 = pneg %p198
        %p321 = scmp.lt.s32.totalorder %s27, 0
        %s322 = scalar_select %p321, %s27, 0
        %s323 = smul.addr %s322, 8
        %s324 = scalar_lea.vmem %s1, %s323
        %p325 = scmp.lt.s32.totalorder %s27, 0
        %s326 = scalar_select %p325, %s27, 0
        %p327 = scmp.lt.s32.totalorder %s28, 1
        %s328 = scalar_select %p327, %s28, 1
        %s329 = smul.addr %s328, 8
        %s330 = smul.addr %s326, 16
        %s331 = sadd.s32 %s329, %s330
        %s332 = smul.addr %s331, 8
        %s333 = scalar_lea.vmem %s5, %s332
        %p335 = scmp.eq.s32.totalorder %s28, 0
        // Predicated region
        $region49: #{name_classify_rnn_sequence.1} parent=39 // pred_check
          %p336 = pneg %p335
        $region50: #{name_classify_rnn_sequence.1} parent=39 // pred_check_branch
          %338 = sbr.rel (%p336) target = $region52
        $region51: #{name_classify_rnn_sequence.1} parent=39 // pred_region
          %v339 = vld [vmem:[%s324] sm:$0xff]
          %340 = vst [vmem:[#allocation2] sm:$0xff] %v339
        $region52: #{name_classify_rnn_sequence.1} parent=39 // pred_fallthru
          _
        %v341 = vld [vmem:[%s280] sm:$0xff]
        %v342 = vld [vmem:[%s280 + $0x8] sm:$0xff]
        %v343 = vld [vmem:[%s280 + $0x10] sm:$0xff]
        %v344 = vld [vmem:[%s280 + $0x18] sm:$0xff]
        %v345 = vld [vmem:[%s280 + $0x20] sm:$0xff]
        %v346 = vld [vmem:[%s280 + $0x28] sm:$0xff]
        %v347 = vld [vmem:[%s280 + $0x30] sm:$0xff]
        %v348 = vld [vmem:[%s280 + $0x38] sm:$0xff]
        %v349 = vpack.c.bf16 %v342, %v341
        %v350 = vpack.c.bf16 %v344, %v343
        %v351 = vpack.c.bf16 %v346, %v345
        %v352 = vpack.c.bf16 %v348, %v347
        %v353 = vld [vmem:[%s2] sm:$0xff]
        %v354 = vld [vmem:[%s2 + $0x8] sm:$0xff]
        %v355 = vld [vmem:[%s4] sm:$0x3]
        %v357 = vlaneseq
        %v358 = vshrl.u32 %v357, 7
        %v359 = vsub.s32 0, %v358
        %v360 = vrot.slane %v355, %v359
        %v361 = vlaneseq
        %v362 = vshrl.u32 %v361, 7
        %v363 = vsub.s32 1, %v362
        %v364 = vrot.slane %v355, %v363
        %v369 = vunpack.c.l.b16 %v353
        %v370 = vunpack.c.h.b16 %v353
        %v371 = vunpack.c.l.b16 %v354
        %v372 = vunpack.c.h.b16 %v354
        %v373 = vpack.c.b16 %v371, %v369
        %v374 = vpack.c.b16 %v372, %v370
        %vm377 = vcmask 130048
        %v379 = vsel %vm377, %v349, 0
        %v382 = vsel %vm377, %v350, 0
        %v385 = vsel %vm377, %v351, 0
        %v388 = vsel %vm377, %v352, 0
        %390 = vmatprep.subr.bf16.mxu0 %v374
        %391 = vmatpush1.bf16.msra.mxu0 %v373
        %392 = vmatprep.subr.bf16.mxu0 0
        %393 = vmatpush1.bf16.msra.mxu0 0
        %394 = vmatprep.subr.bf16.mxu0 0
        %395 = vmatpush1.bf16.msra.mxu0 0
        %396 = vmatprep.subr.bf16.mxu0 0
        %397 = vmatpush1.bf16.msra.mxu0 0
        %398 = vmatprep.subr.bf16.mxu0 0
        %399 = vmatpush1.bf16.msra.mxu0 0
        %400 = vmatprep.subr.bf16.mxu0 0
        %401 = vmatpush1.bf16.msra.mxu0 0
        %402 = vmatprep.subr.bf16.mxu0 0
        %403 = vmatpush1.bf16.msra.mxu0 0
        %404 = vmatprep.subr.bf16.mxu0 0
        %405 = vmatpush1.bf16.msra.mxu0 0
        %406 = vmatprep.subr.bf16.mxu0 0
        %407 = vmatpush1.bf16.msra.mxu0 0
        %408 = vmatprep.subr.bf16.mxu0 0
        %409 = vmatpush1.bf16.msra.mxu0 0
        %410 = vmatprep.subr.bf16.mxu0 0
        %411 = vmatpush1.bf16.msra.mxu0 0
        %412 = vmatprep.subr.bf16.mxu0 0
        %413 = vmatpush1.bf16.msra.mxu0 0
        %414 = vmatprep.subr.bf16.mxu0 0
        %415 = vmatpush1.bf16.msra.mxu0 0
        %416 = vmatprep.subr.bf16.mxu0 0
        %417 = vmatpush1.bf16.msra.mxu0 0
        %418 = vmatprep.subr.bf16.mxu0 0
        %419 = vmatpush1.bf16.msra.mxu0 0
        %420 = vmatprep.subr.bf16.mxu0 0
        %421 = vmatpush1.bf16.msra.mxu0 0
        %422 = vmatprep.mubr.bf16.mxu0 0
        %423 = vmatmul.mubr.bf16.gmra.mrb[0].mxu0 %v379
        %v424 = vpop.f32.mrb[0].mxu0
        %v425 = vadd.f32 %v360, %v424
        %v426 = vpop.f32.mrb[0].mxu0
        %v427 = vadd.f32 %v364, %v426
        %v428 = vpop.f32.mrb[0].mxu0
        %v429 = vadd.f32 %v360, %v428
        %v430 = vpop.f32.mrb[0].mxu0
        %v431 = vadd.f32 %v364, %v430
        %432 = vmatprep.mubr.bf16.mxu0 0
        %433 = vmatmul.mubr.bf16.gmra.mrb[0].mxu0 %v382
        %v434 = vpop.f32.mrb[0].mxu0
        %v435 = vadd.f32 %v360, %v434
        %v436 = vpop.f32.mrb[0].mxu0
        %v437 = vadd.f32 %v364, %v436
        %v438 = vpop.f32.mrb[0].mxu0
        %v439 = vadd.f32 %v360, %v438
        %v440 = vpop.f32.mrb[0].mxu0
        %v441 = vadd.f32 %v364, %v440
        %442 = vmatprep.mubr.bf16.mxu0 0
        %443 = vmatmul.mubr.bf16.gmra.mrb[0].mxu0 %v385
        %v444 = vpop.f32.mrb[0].mxu0
        %v445 = vadd.f32 %v360, %v444
        %v446 = vpop.f32.mrb[0].mxu0
        %v447 = vadd.f32 %v364, %v446
        %v448 = vpop.f32.mrb[0].mxu0
        %v449 = vadd.f32 %v360, %v448
        %v450 = vpop.f32.mrb[0].mxu0
        %v451 = vadd.f32 %v364, %v450
        %452 = vmatprep.mubr.bf16.mxu0 0
        %453 = vmatmul.mubr.bf16.gmra.mrb[0].mxu0 %v388
        %v454 = vpop.f32.mrb[0].mxu0
        %v455 = vadd.f32 %v360, %v454
        %v456 = vpop.f32.mrb[0].mxu0
        %v457 = vadd.f32 %v364, %v456
        %v458 = vpop.f32.mrb[0].mxu0
        %v459 = vadd.f32 %v360, %v458
        %v460 = vpop.f32.mrb[0].mxu0
        %v461 = vadd.f32 %v364, %v460
        %462 = vdwg.mxu0
        %463 = vst [vmem:[#allocation3] sm:$0xff] %v425
        %464 = vst [vmem:[#allocation3 + $0x8] sm:$0xff] %v427
        %465 = vst [vmem:[#allocation3 + $0x10] sm:$0xff] %v429
        %466 = vst [vmem:[#allocation3 + $0x18] sm:$0xff] %v431
        %467 = vst [vmem:[#allocation3 + $0x20] sm:$0xff] %v435
        %468 = vst [vmem:[#allocation3 + $0x28] sm:$0xff] %v437
        %469 = vst [vmem:[#allocation3 + $0x30] sm:$0xff] %v439
        %470 = vst [vmem:[#allocation3 + $0x38] sm:$0xff] %v441
        %471 = vst [vmem:[#allocation3 + $0x40] sm:$0xff] %v445
        %472 = vst [vmem:[#allocation3 + $0x48] sm:$0xff] %v447
        %473 = vst [vmem:[#allocation3 + $0x50] sm:$0xff] %v449
        %474 = vst [vmem:[#allocation3 + $0x58] sm:$0xff] %v451
        %475 = vst [vmem:[#allocation3 + $0x60] sm:$0xff] %v455
        %476 = vst [vmem:[#allocation3 + $0x68] sm:$0xff] %v457
        %477 = vst [vmem:[#allocation3 + $0x70] sm:$0xff] %v459
        %478 = vst [vmem:[#allocation3 + $0x78] sm:$0xff] %v461
        %v479 = vld [vmem:[#allocation7] sm:$0xff]
        %v480 = vld [vmem:[#allocation7 + $0x8] sm:$0xff]
        %v481 = vld [vmem:[#allocation7 + $0x10] sm:$0xff]
        %v482 = vld [vmem:[#allocation7 + $0x18] sm:$0xff]
        %v483 = vld [vmem:[#allocation7 + $0x20] sm:$0xff]
        %v484 = vld [vmem:[#allocation7 + $0x28] sm:$0xff]
        %v485 = vld [vmem:[#allocation7 + $0x30] sm:$0xff]
        %v486 = vld [vmem:[#allocation7 + $0x38] sm:$0xff]
        %v487 = vld [vmem:[#allocation7 + $0x40] sm:$0xff]
        %v488 = vld [vmem:[#allocation7 + $0x48] sm:$0xff]
        %v489 = vld [vmem:[#allocation7 + $0x50] sm:$0xff]
        %v490 = vld [vmem:[#allocation7 + $0x58] sm:$0xff]
        %v491 = vld [vmem:[#allocation7 + $0x60] sm:$0xff]
        %v492 = vld [vmem:[#allocation7 + $0x68] sm:$0xff]
        %v493 = vld [vmem:[#allocation7 + $0x70] sm:$0xff]
        %v494 = vld [vmem:[#allocation7 + $0x78] sm:$0xff]
        %v495 = vld [vmem:[#allocation2] sm:$0xff]
        %v496 = vld [vmem:[#allocation3] sm:$0xff]
        %v497 = vld [vmem:[#allocation3 + $0x8] sm:$0xff]
        %v498 = vpack.c.bf16 %v495, %v495
        %v515 = vunpack.c.l.b16 %v479
        %v516 = vunpack.c.h.b16 %v479
        %v517 = vunpack.c.l.b16 %v480
        %v518 = vunpack.c.h.b16 %v480
        %v519 = vunpack.c.l.b16 %v481
        %v520 = vunpack.c.h.b16 %v481
        %v521 = vunpack.c.l.b16 %v482
        %v522 = vunpack.c.h.b16 %v482
        %v523 = vunpack.c.l.b16 %v483
        %v524 = vunpack.c.h.b16 %v483
        %v525 = vunpack.c.l.b16 %v484
        %v526 = vunpack.c.h.b16 %v484
        %v527 = vunpack.c.l.b16 %v485
        %v528 = vunpack.c.h.b16 %v485
        %v529 = vunpack.c.l.b16 %v486
        %v530 = vunpack.c.h.b16 %v486
        %v531 = vunpack.c.l.b16 %v487
        %v532 = vunpack.c.h.b16 %v487
        %v533 = vunpack.c.l.b16 %v488
        %v534 = vunpack.c.h.b16 %v488
        %v535 = vunpack.c.l.b16 %v489
        %v536 = vunpack.c.h.b16 %v489
        %v537 = vunpack.c.l.b16 %v490
        %v538 = vunpack.c.h.b16 %v490
        %v539 = vunpack.c.l.b16 %v491
        %v540 = vunpack.c.h.b16 %v491
        %v541 = vunpack.c.l.b16 %v492
        %v542 = vunpack.c.h.b16 %v492
        %v543 = vunpack.c.l.b16 %v493
        %v544 = vunpack.c.h.b16 %v493
        %v545 = vunpack.c.l.b16 %v494
        %v546 = vunpack.c.h.b16 %v494
        %v547 = vpack.c.b16 %v517, %v515
        %v548 = vpack.c.b16 %v518, %v516
        %v549 = vpack.c.b16 %v521, %v519
        %v550 = vpack.c.b16 %v522, %v520
        %v551 = vpack.c.b16 %v525, %v523
        %v552 = vpack.c.b16 %v526, %v524
        %v553 = vpack.c.b16 %v529, %v527
        %v554 = vpack.c.b16 %v530, %v528
        %v555 = vpack.c.b16 %v533, %v531
        %v556 = vpack.c.b16 %v534, %v532
        %v557 = vpack.c.b16 %v537, %v535
        %v558 = vpack.c.b16 %v538, %v536
        %v559 = vpack.c.b16 %v541, %v539
        %v560 = vpack.c.b16 %v542, %v540
        %v561 = vpack.c.b16 %v545, %v543
        %v562 = vpack.c.b16 %v546, %v544
        %579 = vmatprep.subr.bf16.mxu0 %v548
        %580 = vmatpush1.bf16.msra.mxu0 %v547
        %581 = vmatprep.subr.bf16.mxu0 %v550
        %582 = vmatpush1.bf16.msra.mxu0 %v549
        %583 = vmatprep.subr.bf16.mxu0 %v552
        %584 = vmatpush1.bf16.msra.mxu0 %v551
        %585 = vmatprep.subr.bf16.mxu0 %v554
        %586 = vmatpush1.bf16.msra.mxu0 %v553
        %587 = vmatprep.subr.bf16.mxu0 %v556
        %588 = vmatpush1.bf16.msra.mxu0 %v555
        %589 = vmatprep.subr.bf16.mxu0 %v558
        %590 = vmatpush1.bf16.msra.mxu0 %v557
        %591 = vmatprep.subr.bf16.mxu0 %v560
        %592 = vmatpush1.bf16.msra.mxu0 %v559
        %593 = vmatprep.subr.bf16.mxu0 %v562
        %594 = vmatpush1.bf16.msra.mxu0 %v561
        %595 = vmatprep.subr.bf16.mxu0 0
        %596 = vmatpush1.bf16.msra.mxu0 0
        %597 = vmatprep.subr.bf16.mxu0 0
        %598 = vmatpush1.bf16.msra.mxu0 0
        %599 = vmatprep.subr.bf16.mxu0 0
        %600 = vmatpush1.bf16.msra.mxu0 0
        %601 = vmatprep.subr.bf16.mxu0 0
        %602 = vmatpush1.bf16.msra.mxu0 0
        %603 = vmatprep.subr.bf16.mxu0 0
        %604 = vmatpush1.bf16.msra.mxu0 0
        %605 = vmatprep.subr.bf16.mxu0 0
        %606 = vmatpush1.bf16.msra.mxu0 0
        %607 = vmatprep.subr.bf16.mxu0 0
        %608 = vmatpush1.bf16.msra.mxu0 0
        %609 = vmatprep.subr.bf16.mxu0 0
        %610 = vmatpush1.bf16.msra.mxu0 0
        %611 = vmatprep.mubr.bf16.mxu0 0
        %612 = vmatmul.mubr.bf16.gmra.mrb[0].mxu0 %v498
        %v613 = vpop.f32.mrb[0].mxu0
        %v614 = vadd.f32 0.0, %v613
        %v615 = vpop.f32.mrb[0].mxu0
        %v616 = vadd.f32 0.0, %v615
        %v617 = vpop.f32.mrb[0].mxu0
        %v618 = vpop.f32.mrb[0].mxu0
        %619 = vdwg.mxu0
        %v620 = vadd.f32 %v496, %v614
        %v621 = vadd.f32 %v497, %v616
        %622 = vmax.xlane.f32.xlu0 %v621
        %v623 = vpop.xlane.xlu0 %622
        %v624 = vsub.f32 %v621, %v623
        %v625 = vmul.f32 %v624, 1.442695
        %v626 = vpow.pop %v625
        %627 = vadd.xlane.f32.xlu0 %v626
        %v628 = vpop.xlane.xlu0 %627
        %v629 = vlog2.pop %v628
        %v630 = vmul.f32 %v629, 0.6931472
        %v631 = vsub.f32 %v624, %v630
        %632 = vst [vmem:[%s333] sm:$0xff] %v631
        %v633 = vld [vmem:[#allocation3 + $0x10] sm:$0xff]
        %v634 = vld [vmem:[#allocation3 + $0x18] sm:$0xff]
        %v635 = vpack.c.bf16 %v620, %v620
        %636 = vmatprep.subr.bf16.mxu0 %v548
        %637 = vmatpush1.bf16.msra.mxu0 %v547
        %638 = vmatprep.subr.bf16.mxu0 %v550
        %639 = vmatpush1.bf16.msra.mxu0 %v549
        %640 = vmatprep.subr.bf16.mxu0 %v552
        %641 = vmatpush1.bf16.msra.mxu0 %v551
        %642 = vmatprep.subr.bf16.mxu0 %v554
        %643 = vmatpush1.bf16.msra.mxu0 %v553
        %644 = vmatprep.subr.bf16.mxu0 %v556
        %645 = vmatpush1.bf16.msra.mxu0 %v555
        %646 = vmatprep.subr.bf16.mxu0 %v558
        %647 = vmatpush1.bf16.msra.mxu0 %v557
        %648 = vmatprep.subr.bf16.mxu0 %v560
        %649 = vmatpush1.bf16.msra.mxu0 %v559
        %650 = vmatprep.subr.bf16.mxu0 %v562
        %651 = vmatpush1.bf16.msra.mxu0 %v561
        %652 = vmatprep.subr.bf16.mxu0 0
        %653 = vmatpush1.bf16.msra.mxu0 0
        %654 = vmatprep.subr.bf16.mxu0 0
        %655 = vmatpush1.bf16.msra.mxu0 0
        %656 = vmatprep.subr.bf16.mxu0 0
        %657 = vmatpush1.bf16.msra.mxu0 0
        %658 = vmatprep.subr.bf16.mxu0 0
        %659 = vmatpush1.bf16.msra.mxu0 0
        %660 = vmatprep.subr.bf16.mxu0 0
        %661 = vmatpush1.bf16.msra.mxu0 0
        %662 = vmatprep.subr.bf16.mxu0 0
        %663 = vmatpush1.bf16.msra.mxu0 0
        %664 = vmatprep.subr.bf16.mxu0 0
        %665 = vmatpush1.bf16.msra.mxu0 0
        %666 = vmatprep.subr.bf16.mxu0 0
        %667 = vmatpush1.bf16.msra.mxu0 0
        %668 = vmatprep.mubr.bf16.mxu0 0
        %669 = vmatmul.mubr.bf16.gmra.mrb[0].mxu0 %v635
        %v670 = vpop.f32.mrb[0].mxu0
        %v671 = vadd.f32 0.0, %v670
        %v672 = vpop.f32.mrb[0].mxu0
        %v673 = vadd.f32 0.0, %v672
        %v674 = vpop.f32.mrb[0].mxu0
        %v675 = vpop.f32.mrb[0].mxu0
        %676 = vdwg.mxu0
        %v677 = vadd.f32 %v633, %v671
        %v678 = vadd.f32 %v634, %v673
        %679 = vmax.xlane.f32.xlu0 %v678
        %v680 = vpop.xlane.xlu0 %679
        %v681 = vsub.f32 %v678, %v680
        %v682 = vmul.f32 %v681, 1.442695
        %v683 = vpow.pop %v682
        %684 = vadd.xlane.f32.xlu0 %v683
        %v685 = vpop.xlane.xlu0 %684
        %v686 = vlog2.pop %v685
        %v687 = vmul.f32 %v686, 0.6931472
        %v688 = vsub.f32 %v681, %v687
        %689 = vst [vmem:[%s333 + $0x8] sm:$0xff] %v688
        %v690 = vld [vmem:[#allocation3 + $0x20] sm:$0xff]
        %v691 = vld [vmem:[#allocation3 + $0x28] sm:$0xff]
        %v692 = vpack.c.bf16 %v677, %v677
        %693 = vmatprep.subr.bf16.mxu0 %v548
        %694 = vmatpush1.bf16.msra.mxu0 %v547
        %695 = vmatprep.subr.bf16.mxu0 %v550
        %696 = vmatpush1.bf16.msra.mxu0 %v549
        %697 = vmatprep.subr.bf16.mxu0 %v552
        %698 = vmatpush1.bf16.msra.mxu0 %v551
        %699 = vmatprep.subr.bf16.mxu0 %v554
        %700 = vmatpush1.bf16.msra.mxu0 %v553
        %701 = vmatprep.subr.bf16.mxu0 %v556
        %702 = vmatpush1.bf16.msra.mxu0 %v555
        %703 = vmatprep.subr.bf16.mxu0 %v558
        %704 = vmatpush1.bf16.msra.mxu0 %v557
        %705 = vmatprep.subr.bf16.mxu0 %v560
        %706 = vmatpush1.bf16.msra.mxu0 %v559
        %707 = vmatprep.subr.bf16.mxu0 %v562
        %708 = vmatpush1.bf16.msra.mxu0 %v561
        %709 = vmatprep.subr.bf16.mxu0 0
        %710 = vmatpush1.bf16.msra.mxu0 0
        %711 = vmatprep.subr.bf16.mxu0 0
        %712 = vmatpush1.bf16.msra.mxu0 0
        %713 = vmatprep.subr.bf16.mxu0 0
        %714 = vmatpush1.bf16.msra.mxu0 0
        %715 = vmatprep.subr.bf16.mxu0 0
        %716 = vmatpush1.bf16.msra.mxu0 0
        %717 = vmatprep.subr.bf16.mxu0 0
        %718 = vmatpush1.bf16.msra.mxu0 0
        %719 = vmatprep.subr.bf16.mxu0 0
        %720 = vmatpush1.bf16.msra.mxu0 0
        %721 = vmatprep.subr.bf16.mxu0 0
        %722 = vmatpush1.bf16.msra.mxu0 0
        %723 = vmatprep.subr.bf16.mxu0 0
        %724 = vmatpush1.bf16.msra.mxu0 0
        %725 = vmatprep.mubr.bf16.mxu0 0
        %726 = vmatmul.mubr.bf16.gmra.mrb[0].mxu0 %v692
        %v727 = vpop.f32.mrb[0].mxu0
        %v728 = vadd.f32 0.0, %v727
        %v729 = vpop.f32.mrb[0].mxu0
        %v730 = vadd.f32 0.0, %v729
        %v731 = vpop.f32.mrb[0].mxu0
        %v732 = vpop.f32.mrb[0].mxu0
        %733 = vdwg.mxu0
        %v734 = vadd.f32 %v690, %v728
        %v735 = vadd.f32 %v691, %v730
        %736 = vmax.xlane.f32.xlu0 %v735
        %v737 = vpop.xlane.xlu0 %736
        %v738 = vsub.f32 %v735, %v737
        %v739 = vmul.f32 %v738, 1.442695
        %v740 = vpow.pop %v739
        %741 = vadd.xlane.f32.xlu0 %v740
        %v742 = vpop.xlane.xlu0 %741
        %v743 = vlog2.pop %v742
        %v744 = vmul.f32 %v743, 0.6931472
        %v745 = vsub.f32 %v738, %v744
        %746 = vst [vmem:[%s333 + $0x10] sm:$0xff] %v745
        %v747 = vld [vmem:[#allocation3 + $0x30] sm:$0xff]
        %v748 = vld [vmem:[#allocation3 + $0x38] sm:$0xff]
        %v749 = vpack.c.bf16 %v734, %v734
        %750 = vmatprep.subr.bf16.mxu0 %v548
        %751 = vmatpush1.bf16.msra.mxu0 %v547
        %752 = vmatprep.subr.bf16.mxu0 %v550
        %753 = vmatpush1.bf16.msra.mxu0 %v549
        %754 = vmatprep.subr.bf16.mxu0 %v552
        %755 = vmatpush1.bf16.msra.mxu0 %v551
        %756 = vmatprep.subr.bf16.mxu0 %v554
        %757 = vmatpush1.bf16.msra.mxu0 %v553
        %758 = vmatprep.subr.bf16.mxu0 %v556
        %759 = vmatpush1.bf16.msra.mxu0 %v555
        %760 = vmatprep.subr.bf16.mxu0 %v558
        %761 = vmatpush1.bf16.msra.mxu0 %v557
        %762 = vmatprep.subr.bf16.mxu0 %v560
        %763 = vmatpush1.bf16.msra.mxu0 %v559
        %764 = vmatprep.subr.bf16.mxu0 %v562
        %765 = vmatpush1.bf16.msra.mxu0 %v561
        %766 = vmatprep.subr.bf16.mxu0 0
        %767 = vmatpush1.bf16.msra.mxu0 0
        %768 = vmatprep.subr.bf16.mxu0 0
        %769 = vmatpush1.bf16.msra.mxu0 0
        %770 = vmatprep.subr.bf16.mxu0 0
        %771 = vmatpush1.bf16.msra.mxu0 0
        %772 = vmatprep.subr.bf16.mxu0 0
        %773 = vmatpush1.bf16.msra.mxu0 0
        %774 = vmatprep.subr.bf16.mxu0 0
        %775 = vmatpush1.bf16.msra.mxu0 0
        %776 = vmatprep.subr.bf16.mxu0 0
        %777 = vmatpush1.bf16.msra.mxu0 0
        %778 = vmatprep.subr.bf16.mxu0 0
        %779 = vmatpush1.bf16.msra.mxu0 0
        %780 = vmatprep.subr.bf16.mxu0 0
        %781 = vmatpush1.bf16.msra.mxu0 0
        %782 = vmatprep.mubr.bf16.mxu0 0
        %783 = vmatmul.mubr.bf16.gmra.mrb[0].mxu0 %v749
        %v784 = vpop.f32.mrb[0].mxu0
        %v785 = vadd.f32 0.0, %v784
        %v786 = vpop.f32.mrb[0].mxu0
        %v787 = vadd.f32 0.0, %v786
        %v788 = vpop.f32.mrb[0].mxu0
        %v789 = vpop.f32.mrb[0].mxu0
        %790 = vdwg.mxu0
        %v791 = vadd.f32 %v747, %v785
        %v792 = vadd.f32 %v748, %v787
        %793 = vmax.xlane.f32.xlu0 %v792
        %v794 = vpop.xlane.xlu0 %793
        %v795 = vsub.f32 %v792, %v794
        %v796 = vmul.f32 %v795, 1.442695
        %v797 = vpow.pop %v796
        %798 = vadd.xlane.f32.xlu0 %v797
        %v799 = vpop.xlane.xlu0 %798
        %v800 = vlog2.pop %v799
        %v801 = vmul.f32 %v800, 0.6931472
        %v802 = vsub.f32 %v795, %v801
        %803 = vst [vmem:[%s333 + $0x18] sm:$0xff] %v802
        %v804 = vld [vmem:[#allocation3 + $0x40] sm:$0xff]
        %v805 = vld [vmem:[#allocation3 + $0x48] sm:$0xff]
        %v806 = vpack.c.bf16 %v791, %v791
        %807 = vmatprep.subr.bf16.mxu0 %v548
        %808 = vmatpush1.bf16.msra.mxu0 %v547
        %809 = vmatprep.subr.bf16.mxu0 %v550
        %810 = vmatpush1.bf16.msra.mxu0 %v549
        %811 = vmatprep.subr.bf16.mxu0 %v552
        %812 = vmatpush1.bf16.msra.mxu0 %v551
        %813 = vmatprep.subr.bf16.mxu0 %v554
        %814 = vmatpush1.bf16.msra.mxu0 %v553
        %815 = vmatprep.subr.bf16.mxu0 %v556
        %816 = vmatpush1.bf16.msra.mxu0 %v555
        %817 = vmatprep.subr.bf16.mxu0 %v558
        %818 = vmatpush1.bf16.msra.mxu0 %v557
        %819 = vmatprep.subr.bf16.mxu0 %v560
        %820 = vmatpush1.bf16.msra.mxu0 %v559
        %821 = vmatprep.subr.bf16.mxu0 %v562
        %822 = vmatpush1.bf16.msra.mxu0 %v561
        %823 = vmatprep.subr.bf16.mxu0 0
        %824 = vmatpush1.bf16.msra.mxu0 0
        %825 = vmatprep.subr.bf16.mxu0 0
        %826 = vmatpush1.bf16.msra.mxu0 0
        %827 = vmatprep.subr.bf16.mxu0 0
        %828 = vmatpush1.bf16.msra.mxu0 0
        %829 = vmatprep.subr.bf16.mxu0 0
        %830 = vmatpush1.bf16.msra.mxu0 0
        %831 = vmatprep.subr.bf16.mxu0 0
        %832 = vmatpush1.bf16.msra.mxu0 0
        %833 = vmatprep.subr.bf16.mxu0 0
        %834 = vmatpush1.bf16.msra.mxu0 0
        %835 = vmatprep.subr.bf16.mxu0 0
        %836 = vmatpush1.bf16.msra.mxu0 0
        %837 = vmatprep.subr.bf16.mxu0 0
        %838 = vmatpush1.bf16.msra.mxu0 0
        %839 = vmatprep.mubr.bf16.mxu0 0
        %840 = vmatmul.mubr.bf16.gmra.mrb[0].mxu0 %v806
        %v841 = vpop.f32.mrb[0].mxu0
        %v842 = vadd.f32 0.0, %v841
        %v843 = vpop.f32.mrb[0].mxu0
        %v844 = vadd.f32 0.0, %v843
        %v845 = vpop.f32.mrb[0].mxu0
        %v846 = vpop.f32.mrb[0].mxu0
        %847 = vdwg.mxu0
        %v848 = vadd.f32 %v804, %v842
        %v849 = vadd.f32 %v805, %v844
        %850 = vmax.xlane.f32.xlu0 %v849
        %v851 = vpop.xlane.xlu0 %850
        %v852 = vsub.f32 %v849, %v851
        %v853 = vmul.f32 %v852, 1.442695
        %v854 = vpow.pop %v853
        %855 = vadd.xlane.f32.xlu0 %v854
        %v856 = vpop.xlane.xlu0 %855
        %v857 = vlog2.pop %v856
        %v858 = vmul.f32 %v857, 0.6931472
        %v859 = vsub.f32 %v852, %v858
        %860 = vst [vmem:[%s333 + $0x20] sm:$0xff] %v859
        %v861 = vld [vmem:[#allocation3 + $0x50] sm:$0xff]
        %v862 = vld [vmem:[#allocation3 + $0x58] sm:$0xff]
        %v863 = vpack.c.bf16 %v848, %v848
        %864 = vmatprep.subr.bf16.mxu0 %v548
        %865 = vmatpush1.bf16.msra.mxu0 %v547
        %866 = vmatprep.subr.bf16.mxu0 %v550
        %867 = vmatpush1.bf16.msra.mxu0 %v549
        %868 = vmatprep.subr.bf16.mxu0 %v552
        %869 = vmatpush1.bf16.msra.mxu0 %v551
        %870 = vmatprep.subr.bf16.mxu0 %v554
        %871 = vmatpush1.bf16.msra.mxu0 %v553
        %872 = vmatprep.subr.bf16.mxu0 %v556
        %873 = vmatpush1.bf16.msra.mxu0 %v555
        %874 = vmatprep.subr.bf16.mxu0 %v558
        %875 = vmatpush1.bf16.msra.mxu0 %v557
        %876 = vmatprep.subr.bf16.mxu0 %v560
        %877 = vmatpush1.bf16.msra.mxu0 %v559
        %878 = vmatprep.subr.bf16.mxu0 %v562
        %879 = vmatpush1.bf16.msra.mxu0 %v561
        %880 = vmatprep.subr.bf16.mxu0 0
        %881 = vmatpush1.bf16.msra.mxu0 0
        %882 = vmatprep.subr.bf16.mxu0 0
        %883 = vmatpush1.bf16.msra.mxu0 0
        %884 = vmatprep.subr.bf16.mxu0 0
        %885 = vmatpush1.bf16.msra.mxu0 0
        %886 = vmatprep.subr.bf16.mxu0 0
        %887 = vmatpush1.bf16.msra.mxu0 0
        %888 = vmatprep.subr.bf16.mxu0 0
        %889 = vmatpush1.bf16.msra.mxu0 0
        %890 = vmatprep.subr.bf16.mxu0 0
        %891 = vmatpush1.bf16.msra.mxu0 0
        %892 = vmatprep.subr.bf16.mxu0 0
        %893 = vmatpush1.bf16.msra.mxu0 0
        %894 = vmatprep.subr.bf16.mxu0 0
        %895 = vmatpush1.bf16.msra.mxu0 0
        %896 = vmatprep.mubr.bf16.mxu0 0
        %897 = vmatmul.mubr.bf16.gmra.mrb[0].mxu0 %v863
        %v898 = vpop.f32.mrb[0].mxu0
        %v899 = vadd.f32 0.0, %v898
        %v900 = vpop.f32.mrb[0].mxu0
        %v901 = vadd.f32 0.0, %v900
        %v902 = vpop.f32.mrb[0].mxu0
        %v903 = vpop.f32.mrb[0].mxu0
        %904 = vdwg.mxu0
        %v905 = vadd.f32 %v861, %v899
        %v906 = vadd.f32 %v862, %v901
        %907 = vmax.xlane.f32.xlu0 %v906
        %v908 = vpop.xlane.xlu0 %907
        %v909 = vsub.f32 %v906, %v908
        %v910 = vmul.f32 %v909, 1.442695
        %v911 = vpow.pop %v910
        %912 = vadd.xlane.f32.xlu0 %v911
        %v913 = vpop.xlane.xlu0 %912
        %v914 = vlog2.pop %v913
        %v915 = vmul.f32 %v914, 0.6931472
        %v916 = vsub.f32 %v909, %v915
        %917 = vst [vmem:[%s333 + $0x28] sm:$0xff] %v916
        %v918 = vld [vmem:[#allocation3 + $0x60] sm:$0xff]
        %v919 = vld [vmem:[#allocation3 + $0x68] sm:$0xff]
        %v920 = vpack.c.bf16 %v905, %v905
        %921 = vmatprep.subr.bf16.mxu0 %v548
        %922 = vmatpush1.bf16.msra.mxu0 %v547
        %923 = vmatprep.subr.bf16.mxu0 %v550
        %924 = vmatpush1.bf16.msra.mxu0 %v549
        %925 = vmatprep.subr.bf16.mxu0 %v552
        %926 = vmatpush1.bf16.msra.mxu0 %v551
        %927 = vmatprep.subr.bf16.mxu0 %v554
        %928 = vmatpush1.bf16.msra.mxu0 %v553
        %929 = vmatprep.subr.bf16.mxu0 %v556
        %930 = vmatpush1.bf16.msra.mxu0 %v555
        %931 = vmatprep.subr.bf16.mxu0 %v558
        %932 = vmatpush1.bf16.msra.mxu0 %v557
        %933 = vmatprep.subr.bf16.mxu0 %v560
        %934 = vmatpush1.bf16.msra.mxu0 %v559
        %935 = vmatprep.subr.bf16.mxu0 %v562
        %936 = vmatpush1.bf16.msra.mxu0 %v561
        %937 = vmatprep.subr.bf16.mxu0 0
        %938 = vmatpush1.bf16.msra.mxu0 0
        %939 = vmatprep.subr.bf16.mxu0 0
        %940 = vmatpush1.bf16.msra.mxu0 0
        %941 = vmatprep.subr.bf16.mxu0 0
        %942 = vmatpush1.bf16.msra.mxu0 0
        %943 = vmatprep.subr.bf16.mxu0 0
        %944 = vmatpush1.bf16.msra.mxu0 0
        %945 = vmatprep.subr.bf16.mxu0 0
        %946 = vmatpush1.bf16.msra.mxu0 0
        %947 = vmatprep.subr.bf16.mxu0 0
        %948 = vmatpush1.bf16.msra.mxu0 0
        %949 = vmatprep.subr.bf16.mxu0 0
        %950 = vmatpush1.bf16.msra.mxu0 0
        %951 = vmatprep.subr.bf16.mxu0 0
        %952 = vmatpush1.bf16.msra.mxu0 0
        %953 = vmatprep.mubr.bf16.mxu0 0
        %954 = vmatmul.mubr.bf16.gmra.mrb[0].mxu0 %v920
        %v955 = vpop.f32.mrb[0].mxu0
        %v956 = vadd.f32 0.0, %v955
        %v957 = vpop.f32.mrb[0].mxu0
        %v958 = vadd.f32 0.0, %v957
        %v959 = vpop.f32.mrb[0].mxu0
        %v960 = vpop.f32.mrb[0].mxu0
        %961 = vdwg.mxu0
        %v962 = vadd.f32 %v918, %v956
        %v963 = vadd.f32 %v919, %v958
        %964 = vmax.xlane.f32.xlu0 %v963
        %v965 = vpop.xlane.xlu0 %964
        %v966 = vsub.f32 %v963, %v965
        %v967 = vmul.f32 %v966, 1.442695
        %v968 = vpow.pop %v967
        %969 = vadd.xlane.f32.xlu0 %v968
        %v970 = vpop.xlane.xlu0 %969
        %v971 = vlog2.pop %v970
        %v972 = vmul.f32 %v971, 0.6931472
        %v973 = vsub.f32 %v966, %v972
        %974 = vst [vmem:[%s333 + $0x30] sm:$0xff] %v973
        %v975 = vld [vmem:[#allocation3 + $0x70] sm:$0xff]
        %v976 = vld [vmem:[#allocation3 + $0x78] sm:$0xff]
        %v977 = vpack.c.bf16 %v962, %v962
        %978 = vmatprep.subr.bf16.mxu0 %v548
        %979 = vmatpush1.bf16.msra.mxu0 %v547
        %980 = vmatprep.subr.bf16.mxu0 %v550
        %981 = vmatpush1.bf16.msra.mxu0 %v549
        %982 = vmatprep.subr.bf16.mxu0 %v552
        %983 = vmatpush1.bf16.msra.mxu0 %v551
        %984 = vmatprep.subr.bf16.mxu0 %v554
        %985 = vmatpush1.bf16.msra.mxu0 %v553
        %986 = vmatprep.subr.bf16.mxu0 %v556
        %987 = vmatpush1.bf16.msra.mxu0 %v555
        %988 = vmatprep.subr.bf16.mxu0 %v558
        %989 = vmatpush1.bf16.msra.mxu0 %v557
        %990 = vmatprep.subr.bf16.mxu0 %v560
        %991 = vmatpush1.bf16.msra.mxu0 %v559
        %992 = vmatprep.subr.bf16.mxu0 %v562
        %993 = vmatpush1.bf16.msra.mxu0 %v561
        %994 = vmatprep.subr.bf16.mxu0 0
        %995 = vmatpush1.bf16.msra.mxu0 0
        %996 = vmatprep.subr.bf16.mxu0 0
        %997 = vmatpush1.bf16.msra.mxu0 0
        %998 = vmatprep.subr.bf16.mxu0 0
        %999 = vmatpush1.bf16.msra.mxu0 0
        %1000 = vmatprep.subr.bf16.mxu0 0
        %1001 = vmatpush1.bf16.msra.mxu0 0
        %1002 = vmatprep.subr.bf16.mxu0 0
        %1003 = vmatpush1.bf16.msra.mxu0 0
        %1004 = vmatprep.subr.bf16.mxu0 0
        %1005 = vmatpush1.bf16.msra.mxu0 0
        %1006 = vmatprep.subr.bf16.mxu0 0
        %1007 = vmatpush1.bf16.msra.mxu0 0
        %1008 = vmatprep.subr.bf16.mxu0 0
        %1009 = vmatpush1.bf16.msra.mxu0 0
        %1010 = vmatprep.mubr.bf16.mxu0 0
        %1011 = vmatmul.mubr.bf16.gmra.mrb[0].mxu0 %v977
        %v1012 = vpop.f32.mrb[0].mxu0
        %v1013 = vadd.f32 0.0, %v1012
        %v1014 = vpop.f32.mrb[0].mxu0
        %v1015 = vadd.f32 0.0, %v1014
        %v1016 = vpop.f32.mrb[0].mxu0
        %v1017 = vpop.f32.mrb[0].mxu0
        %1018 = vdwg.mxu0
        %v1019 = vadd.f32 %v975, %v1013
        %v1020 = vadd.f32 %v976, %v1015
        %1021 = vmax.xlane.f32.xlu0 %v1020
        %v1022 = vpop.xlane.xlu0 %1021
        %v1023 = vsub.f32 %v1020, %v1022
        %v1024 = vmul.f32 %v1023, 1.442695
        %v1025 = vpow.pop %v1024
        %1026 = vadd.xlane.f32.xlu0 %v1025
        %v1027 = vpop.xlane.xlu0 %1026
        %v1028 = vlog2.pop %v1027
        %v1029 = vmul.f32 %v1028, 0.6931472
        %v1030 = vsub.f32 %v1023, %v1029
        %1031 = vst [vmem:[%s333 + $0x38] sm:$0xff] %v1030
        %1032 = vst [vmem:[#allocation2] sm:$0xff] %v1019
        %p1033 = scmp.eq.s32.totalorder %s28, 1
        // Predicated region
        $region53: #{name_classify_rnn_sequence.1} parent=39 // pred_check
          %p1034 = pneg %p1033
        $region54: #{name_classify_rnn_sequence.1} parent=39 // pred_check_branch
          %1036 = sbr.rel (%p1034) target = $region56
        $region55: #{name_classify_rnn_sequence.1} parent=39 // pred_region
          %1037 = vst [vmem:[#allocation9] sm:$0xff] %v1019
        $region56: #{name_classify_rnn_sequence.1} parent=39 // pred_fallthru
          _
        %p1038 = scmp.lt.s32.totalorder %s27, 0
        %s1039 = scalar_select %p1038, %s27, 0
        %p1040 = scmp.lt.s32.totalorder %s28, 1
        %s1041 = scalar_select %p1040, %s28, 1
        %s1042 = smul.addr %s1041, 8
        %s1043 = smul.addr %s1039, 16
        %s1044 = sadd.s32 %s1042, %s1043
        %s1045 = smul.addr %s1044, 8
        %s1046 = scalar_lea.vmem %s5, %s1045
        // Predicated region
        $region57: #{name_classify_rnn_sequence.1} parent=39 // pred_check
          %p1047 = pneg %p172
        $region58: #{name_classify_rnn_sequence.1} parent=39 // pred_check_branch
          %1049 = sbr.rel (%p1047) target = $region60
        $region59: #{name_classify_rnn_sequence.1} parent=39 // pred_region
          _
        $region60: #{name_classify_rnn_sequence.1} parent=39 // pred_fallthru
          _
        // Predicated region
        $region61: #{name_classify_rnn_sequence.1} parent=39 // pred_check
          %p1050 = pneg %p198
        $region62: #{name_classify_rnn_sequence.1} parent=39 // pred_check_branch
          %1052 = sbr.rel (%p1050) target = $region64
        $region63: #{name_classify_rnn_sequence.1} parent=39 // pred_region
          %s1054 = ssub.s32 128, 128
          %1055 = vsyncadd [#allocation6], %s1054
          %s1056 = smul.addr %s27, 128
          %s1057 = scalar_lea.hbm %s6, %s1056
          %s1059 = sshll.u32 [#allocation9], 4
          %s1060 = int_to_ptr.vmem [resolvable:$true] %s1059
          %1062 = dma.vmem_to_hbm [thread:$0]  %s1060, 128, %s1057, [#allocation6]
        $region64: #{name_classify_rnn_sequence.1} parent=39 // pred_fallthru
          _
        // Predicated region
        $region65: #{name_classify_rnn_sequence.1} parent=39 // pred_check
          %p1063 = pneg %p198
        $region66: #{name_classify_rnn_sequence.1} parent=39 // pred_check_branch
          %1065 = sbr.rel (%p1063) target = $region68
        $region67: #{name_classify_rnn_sequence.1} parent=39 // pred_region
          %1066 = dma.done [#allocation6], 128
        $region68: #{name_classify_rnn_sequence.1} parent=39 // pred_fallthru
          _
      $region40: #{name_classify_rnn_sequence.1} parent=5 // pred_fallthru
        _
      %p1067 = scmp.le.s32.totalorder 2, %s18
      // Predicated region
      $region69: #{name_classify_rnn_sequence.1} parent=5 // pred_check
        %p1068 = pneg %p1067
      $region70: #{name_classify_rnn_sequence.1} parent=5 // pred_check_branch
        %1070 = sbr.rel (%p1068) target = $region72
      $region71: #{name_classify_rnn_sequence.1} parent=5 // pred_region
        %s1071 = ssub.s32 %s18, 2
        // Predicated region
        $region73: #{name_classify_rnn_sequence.1} parent=71 // pred_check
          %p1072 = pneg %p178
        $region74: #{name_classify_rnn_sequence.1} parent=71 // pred_check_branch
          %1074 = sbr.rel (%p1072) target = $region76
        $region75: #{name_classify_rnn_sequence.1} parent=71 // pred_region
          %p1075 = scmp.lt.s32.totalorder %s29, 0
          %s1076 = scalar_select %p1075, %s29, 0
          %p1077 = scmp.lt.s32.totalorder %s30, 1
          %s1078 = scalar_select %p1077, %s30, 1
          %s1079 = smul.addr %s1078, 8
          %s1080 = smul.addr %s1076, 16
          %s1081 = sadd.s32 %s1079, %s1080
          %s1082 = smul.addr %s1081, 8
          %s1083 = scalar_lea.vmem %s5, %s1082
        $region76: #{name_classify_rnn_sequence.1} parent=71 // pred_fallthru
          _
      $region72: #{name_classify_rnn_sequence.1} parent=5 // pred_fallthru
        _
    $region6: #{name_classify_rnn_sequence.1} parent=1 // loop_footer
      %s22 = sadd.s32 1, %s18
    $region7: #{name_classify_rnn_sequence.1} parent=1 // loop_footer_branch
      %17 = sbr.rel target = $region3
    $region8: #{name_classify_rnn_sequence.1} parent=1 // loop_exit
      _
    %1084 = vsyncpa [#allocation5], 1
    %s1085 = scalar_lea.sflag [#allocation5], 1
    %1086 = vsyncpa %s1085, 1
    %1087 = vsyncpa [#allocation8], 1
    %1088 = vsyncpa [#allocation6], 1
    %s1089 = scalar_lea.sflag [#allocation6], 1
    %1090 = vsyncpa %s1089, 1

</llo_original>
